<compile_context>
chip_gen: v7x
topology: tpu7x:2x2x1
jax: 0.10.0
libtpu: 0.0.40
codegen_flags: <defaults>
</compile_context>

<pallas_src>
import functools
import math

import jax
import jax.numpy as jnp
from jax.experimental import pallas as pl
from jax.experimental.pallas import tpu as pltpu


def _round_up(v, m):
    return ((v + m - 1) // m) * m


# ----------------------------------------------------------------------------
# Shared math: called from inside the Pallas kernel AND from a plain-JAX
# reference, so both paths execute numerically identical padded/bf16-MXU ops.
# ----------------------------------------------------------------------------
def _mm(a, b):
    # bf16 operands, f32 accumulation on the MXU.
    return jnp.dot(a, b, preferred_element_type=jnp.float32)


def _fused_math(h0, star0, a_in, a_out, p_bf, pt_bf, gmat, pos, lenmask, last1h,
                seqmask, w, *, num_steps, true_d, dp, recip):
    """`num_steps` SGNN-HN propagation steps + attention readout + layer_norm_sum.

    Feature dim is zero-padded to dp (multiple of 128); padded lanes provably
    stay zero through the GRU and readout.  Padded node rows / graph columns
    have all-zero assignment rows so they never leak into star / softmax.
    """
    f32, bf = jnp.float32, jnp.bfloat16
    inv_sqrt_d = 1.0 / math.sqrt(true_d)

    p_f = p_bf.astype(f32)                                             # (Np, Bp) 0/1
    pmask = p_f > 0.0                                                  # hoisted
    valid = (jnp.sum(p_f, axis=-1, keepdims=True) > 0.0).astype(f32)   # (Np, 1)

    def step(_, carry):
        h, star = carry                                   # (Np, Dp), (Bp, Dp) f32
        hb = h.astype(bf)

        # SRGNNConv in/out: the two linears fused along output lanes.
        xio = _mm(hb, w['w_conv']) + w['b_conv']          # (Np, 2*Dp)
        m_in = _mm(a_in, xio[:, :dp].astype(bf)).astype(bf)
        m_out = _mm(a_out, xio[:, dp:].astype(bf)).astype(bf)

        # GRU: per-gate weights fused along output lanes ([r|i|n] blocks).
        gi = _mm(m_in, w['w_mi']) + _mm(m_out, w['w_mo']) + w['b_i']   # (Np, 3*Dp)
        gh = _mm(hb, w['w_h']) + w['b_h']                              # (Np, 3*Dp)
        reset_g = jax.nn.sigmoid(gi[:, :dp] + gh[:, :dp])
        input_g = jax.nn.sigmoid(gi[:, dp:2 * dp] + gh[:, dp:2 * dp])
        new_g = jnp.tanh(gi[:, 2 * dp:] + reset_g * gh[:, 2 * dp:])
        hy = (1.0 - input_g) * h + input_g * new_g

        # Highway mixing with the per-graph star node.
        star_rep = _mm(p_bf, star.astype(bf))             # one-hot row gather
        alpha = jax.nn.sigmoid(jnp.sum(hy * star_rep, -1, keepdims=True) * inv_sqrt_d)
        h_new = (1.0 - alpha) * hy + alpha * star_rep

        # att_out: segment softmax over nodes, kept on (Np, 1) values — only the
        # masked max touches (Np, Bp); exp / reciprocal run on (Np, 1).
        sim2 = jnp.sum(h_new * star_rep, -1, keepdims=True)            # (Np, 1)
        seg_max = jnp.max(jnp.where(pmask, sim2, -1e30), axis=0, keepdims=True)
        node_max = jnp.sum(p_f * seg_max, axis=-1, keepdims=True)      # gather back
        num = valid * jnp.exp(sim2 - node_max)                         # (Np, 1)
        denom = jnp.sum(p_f * num, axis=0, keepdims=True)              # (1, Bp)
        node_denom = jnp.sum(p_f * denom, axis=-1, keepdims=True)      # (Np, 1)
        node_w = num * recip(node_denom + 1e-30)
        star_new = _mm(pt_bf, (node_w * h_new).astype(bf))             # (Bp, Dp)
        return h_new, star_new

    h_fin, star_fin = jax.lax.fori_loop(0, num_steps, step, (h0, star0))

    # ---------------- attention readout (h_fin stays in VMEM) -------------------
    b, l = lenmask.shape
    seq = _mm(gmat, h_fin.astype(bf)).reshape(b, l, dp)    # one-hot alias gather
    seqh = seq + pos[None, :, :] * lenmask[:, :, None]     # + masked pos embedding
    ht = jnp.sum(last1h[:, :, None] * seqh, axis=1)        # (B, Dp) last item
    htb = ht.astype(bf)
    q1 = _mm(htb, w['w1'])
    q2 = _mm(seqh.reshape(b * l, dp).astype(bf), w['w2']).reshape(b, l, dp)
    q3 = _mm(star_fin[:b].astype(bf), w['w3'])
    s = jax.nn.sigmoid(q1[:, None, :] + q2 + q3[:, None, :] + w['b123'][None, :, :])
    att = jnp.sum(s * w['w4'][None, :, :], axis=-1, keepdims=True)     # (B, L, 1)
    a = jnp.sum(att * seqh * seqmask[:, :, None], axis=1)              # (B, Dp)
    # linear_transform without concat: weight split into the `a` / `ht` halves.
    out = _mm(a.astype(bf), w['wta']) + _mm(htb, w['wth']) + w['bt']
    # layer_norm_sum over the TRUE feature dim (padded lanes of `out` are 0).
    lane = jax.lax.broadcasted_iota(jnp.int32, (1, dp), 1)
    lane_mask = (lane < true_d).astype(f32)
    ave = jnp.sum(out, axis=-1, keepdims=True) * (1.0 / true_d)
    c = (out - ave) * lane_mask
    return c * jax.lax.rsqrt(jnp.sum(c * c, axis=-1, keepdims=True) + 1e-24)


# ----------------------------------------------------------------------------
# The single fused Pallas kernel.
# ----------------------------------------------------------------------------
_W_ORDER = ('w_conv', 'b_conv', 'w_mi', 'w_mo', 'b_i', 'w_h', 'b_h',
            'w1', 'w2', 'w3', 'b123', 'w4', 'wta', 'wth', 'bt')
_N_DATA = 11


def _sgnnhn_kernel(*refs, num_steps, true_d, dp):
    (h_ref, star_ref, ain_ref, aout_ref, p_ref, pt_ref, g_ref,
     pos_ref, lenmask_ref, last1h_ref, seqmask_ref) = refs[:_N_DATA]
    w = {k: r[...] for k, r in
         zip(_W_ORDER, refs[_N_DATA:_N_DATA + len(_W_ORDER)])}
    o_ref = refs[-1]
    o_ref[...] = _fused_math(
        h_ref[...], star_ref[...], ain_ref[...], aout_ref[...], p_ref[...],
        pt_ref[...], g_ref[...], pos_ref[...], lenmask_ref[...], last1h_ref[...],
        seqmask_ref[...], w, num_steps=num_steps, true_d=true_d, dp=dp,
        recip=lambda v: pl.reciprocal(v, approx=True))


def sgnnhn_fused(data, kw, num_steps, true_d):
    h0 = data[0]
    b = data[8].shape[0]          # lenmask rows = batch size
    dp = h0.shape[1]
    kernel = functools.partial(_sgnnhn_kernel, num_steps=num_steps,
                               true_d=true_d, dp=dp)
    return pl.pallas_call(
        kernel,
        out_shape=jax.ShapeDtypeStruct((b, dp), jnp.float32),
        compiler_params=pltpu.CompilerParams(
            vmem_limit_bytes=48 * 1024 * 1024),   # explicit: > v5e 16MiB / v6e 32MiB defaults, < v7x 64MiB physical
    )(*data, *[kw[k] for k in _W_ORDER])


# ----------------------------------------------------------------------------
# Host-side glue: embeddings, dense adjacency, one-hot pools, parameter packing.
# ----------------------------------------------------------------------------
def mean_adj(source, target, num_nodes):
    # A[target, source] = 1/deg_in(target): mean aggregation of incoming msgs.
    a = jnp.zeros((num_nodes, num_nodes), jnp.float32)
    a = a.at[target, source].add(1.0)
    deg = jnp.sum(a, axis=1, keepdims=True)
    return jnp.where(deg > 0, a / jnp.maximum(deg, 1.0), 0.0)


def prepare_kernel_params(p, d, dp):
    """Zero-pad weights to lane-dense tiles and fuse per-gate blocks into slabs."""
    def slab(blocks):         # (dp, dp*k) bf16, blocks at 128-aligned column offsets
        full = jnp.zeros((dp, dp * len(blocks)), jnp.float32)
        for i, blk in enumerate(blocks):
            full = full.at[:blk.shape[0], i * dp:i * dp + blk.shape[1]].set(blk)
        return full.astype(jnp.bfloat16)

    def bias(blocks):         # (1, dp*k) f32
        full = jnp.zeros((1, dp * len(blocks)), jnp.float32)
        for i, blk in enumerate(blocks):
            full = full.at[:, i * dp:i * dp + blk.shape[1]].set(blk)
        return full

    wih, whh, bih, bhh = p['wih_t'], p['whh_t'], p['bih'], p['bhh']
    wt = p['wt_t']
    return {
        'w_conv': slab([p['win_t'], p['wout_t']]),
        'b_conv': bias([p['bin'], p['bout']]),
        'w_mi': slab([wih[:d, 0:d], wih[:d, d:2 * d], wih[:d, 2 * d:3 * d]]),
        'w_mo': slab([wih[d:2 * d, 0:d], wih[d:2 * d, d:2 * d],
                      wih[d:2 * d, 2 * d:3 * d]]),
        'b_i': bias([bih[:, 0:d], bih[:, d:2 * d], bih[:, 2 * d:3 * d]]),
        'w_h': slab([whh[:, 0:d], whh[:, d:2 * d], whh[:, 2 * d:3 * d]]),
        'b_h': bias([bhh[:, 0:d], bhh[:, d:2 * d], bhh[:, 2 * d:3 * d]]),
        'w1': slab([p['w1_t']]), 'w2': slab([p['w2_t']]), 'w3': slab([p['w3_t']]),
        'b123': bias([p['b1'] + p['b2'] + p['b3']]),
        'w4': bias([p['w4']]),
        'wta': slab([wt[:d, :]]), 'wth': slab([wt[d:2 * d, :]]),
        'bt': bias([p['bt']]),
    }


def sgnnhn_forward(params, x, edge_index, batch, alias_inputs, item_seq_len, step,
                   use_pallas=True):
    d = params['item_emb'].shape[1]
    dp = _round_up(d, 128)                      # lane-dense feature dim
    n = x.shape[0]
    np_ = _round_up(n, 8)                       # sublane-aligned node count
    b, l = alias_inputs.shape
    bp = _round_up(b, 8)                        # sublane-aligned graph count
    kw = prepare_kernel_params(params, d, dp)

    hidden = params['item_emb'][x]                                        # (N, D)
    hidden_p = jnp.zeros((np_, dp), jnp.float32).at[:n, :d].set(hidden)
    batch_p = jnp.concatenate([batch.astype(jnp.int32),
                               jnp.full((np_ - n,), -1, jnp.int32)])
    p_f32 = (batch_p[:, None] == jnp.arange(bp, dtype=jnp.int32)[None, :]
             ).astype(jnp.float32)                                        # (Np, Bp)
    counts = jnp.maximum(jnp.sum(p_f32, axis=0), 1.0)
    star0 = (p_f32.T @ hidden_p) / counts[:, None]                        # mean pool

    a_in = mean_adj(edge_index[0], edge_index[1], np_).astype(jnp.bfloat16)
    a_out = mean_adj(edge_index[1], edge_index[0], np_).astype(jnp.bfloat16)

    # One-hot alias matrix so hidden[alias_inputs] happens in-kernel (no HBM trip).
    gmat = (alias_inputs.reshape(-1)[:, None] ==
            jnp.arange(np_, dtype=jnp.int32)[None, :]).astype(jnp.bfloat16)

    lenmask = (jnp.arange(l)[None, :] < item_seq_len[:, None]).astype(jnp.float32)
    seq_len_c = jnp.where(item_seq_len == 0, 1, item_seq_len)
    last1h = (jnp.arange(l)[None, :] == (seq_len_c - 1)[:, None]).astype(jnp.float32)
    seqmask = (alias_inputs > 0).astype(jnp.float32)
    pos_p = jnp.zeros((l, dp), jnp.float32).at[:, :d].set(params['pos_emb'][:l])

    data = (hidden_p, star0, a_in, a_out, p_f32.astype(jnp.bfloat16),
            p_f32.T.astype(jnp.bfloat16), gmat, pos_p, lenmask, last1h, seqmask)

    if use_pallas:
        out_p = sgnnhn_fused(data, kw, step, d)
    else:  # plain-JAX mirror of the exact kernel math
        out_p = _fused_math(*data, kw, num_steps=step, true_d=d, dp=dp,
                            recip=lambda v: 1.0 / v)
    return out_p[:, :d]


def reference_forward(params, x, edge_index, batch, alias_inputs, item_seq_len, step):
    """Same padded/bf16 math as the kernel, executed by plain XLA."""
    return sgnnhn_forward(params, x, edge_index, batch, alias_inputs, item_seq_len,
                          step, use_pallas=False)


# ----------------------------------------------------------------------------
# Module-faithful fp32 reference (unpadded, no bf16) for semantic validation.
# ----------------------------------------------------------------------------
def reference_forward_f32(params, x, edge_index, batch, alias_inputs, item_seq_len, step):
    d = params['item_emb'].shape[1]
    n = x.shape[0]
    b, l = alias_inputs.shape
    hidden = params['item_emb'][x]
    p_mat = (batch[:, None] == jnp.arange(b)[None, :]).astype(jnp.float32)
    counts = jnp.maximum(jnp.sum(p_mat, axis=0), 1.0)
    star = (p_mat.T @ hidden) / counts[:, None]
    a_in = mean_adj(edge_index[0], edge_index[1], n)
    a_out = mean_adj(edge_index[1], edge_index[0], n)
    for _ in range(step):
        x_in = hidden @ params['win_t'] + params['bin']
        x_out = hidden @ params['wout_t'] + params['bout']
        inputs = jnp.concatenate([a_in @ x_in, a_out @ x_out], axis=-1)
        gi = inputs @ params['wih_t'] + params['bih']
        gh = hidden @ params['whh_t'] + params['bhh']
        i_r, i_i, i_n = gi[:, :d], gi[:, d:2 * d], gi[:, 2 * d:]
        h_r, h_i, h_n = gh[:, :d], gh[:, d:2 * d], gh[:, 2 * d:]
        r = jax.nn.sigmoid(i_r + h_r)
        z = jax.nn.sigmoid(i_i + h_i)
        ng = jnp.tanh(i_n + r * h_n)
        hy = (1.0 - z) * hidden + z * ng
        star_rep = p_mat @ star
        alpha = jax.nn.sigmoid(jnp.sum(hy * star_rep, -1, keepdims=True) / math.sqrt(d))
        hidden = (1.0 - alpha) * hy + alpha * star_rep
        sim2 = jnp.sum(hidden * star_rep, -1, keepdims=True)
        masked = jnp.where(p_mat > 0, sim2, -1e30)
        seg_max = jnp.max(masked, axis=0, keepdims=True)
        num = jnp.where(p_mat > 0, jnp.exp(sim2 - seg_max), 0.0)
        node_w = jnp.sum(num / jnp.maximum(jnp.sum(num, 0, keepdims=True), 1e-30),
                         1, keepdims=True)
        star = p_mat.T @ (node_w * hidden)
    seq = hidden[alias_inputs]
    mask = (alias_inputs > 0).astype(jnp.float32)[:, :, None]
    lenmask = (jnp.arange(l)[None, :] < item_seq_len[:, None]).astype(jnp.float32)[:, :, None]
    seqh = seq + params['pos_emb'][:l][None, :, :] * lenmask
    sl = jnp.where(item_seq_len == 0, 1, item_seq_len)
    ht = seqh[jnp.arange(b), sl - 1]
    q1 = ht @ params['w1_t'] + params['b1']
    q2 = seqh @ params['w2_t'] + params['b2']
    q3 = star @ params['w3_t'] + params['b3']
    s = jax.nn.sigmoid(q1[:, None, :] + q2 + q3[:, None, :])
    alpha = jnp.sum(s * params['w4'][None, :, :], -1, keepdims=True)
    a = jnp.sum(alpha * seqh * mask, axis=1)
    out = jnp.concatenate([a, ht], axis=-1) @ params['wt_t'] + params['bt']
    ave = jnp.mean(out, -1, keepdims=True)
    c = out - ave
    return c / jnp.sqrt(jnp.sum(c * c, -1, keepdims=True))


# ----------------------------------------------------------------------------
# Deterministic parameter init (mirrors _reset_parameters: U(-1/sqrt(D), 1/sqrt(D)))
# ----------------------------------------------------------------------------
def init_params(key, D, n_items, max_seq_len):
    stdv = 1.0 / math.sqrt(D)
    ks = jax.random.split(key, 24)
    u = lambda k, shape: jax.random.uniform(k, shape, jnp.float32, -stdv, stdv)
    p = {}
    p['item_emb'] = u(ks[0], (n_items + 1, D))   # padding row also uniform (as module)
    p['pos_emb'] = u(ks[1], (max_seq_len, D))
    # SRGNNCell
    p['win_t'] = u(ks[2], (D, D)).T;         p['bin'] = u(ks[3], (D,)).reshape(1, D)
    p['wout_t'] = u(ks[4], (D, D)).T;        p['bout'] = u(ks[5], (D,)).reshape(1, D)
    p['wih_t'] = u(ks[6], (3 * D, 2 * D)).T; p['bih'] = u(ks[7], (3 * D,)).reshape(1, 3 * D)
    p['whh_t'] = u(ks[8], (3 * D, D)).T;     p['bhh'] = u(ks[9], (3 * D,)).reshape(1, 3 * D)
    # readout linears
    p['w1_t'] = u(ks[10], (D, D)).T;         p['b1'] = u(ks[11], (D,)).reshape(1, D)
    p['w2_t'] = u(ks[12], (D, D)).T;         p['b2'] = u(ks[13], (D,)).reshape(1, D)
    p['w3_t'] = u(ks[14], (D, D)).T;         p['b3'] = u(ks[15], (D,)).reshape(1, D)
    p['w4'] = u(ks[16], (1, D))                                   # linear_four, no bias
    p['wt_t'] = u(ks[17], (D, 2 * D)).T;     p['bt'] = u(ks[18], (D,)).reshape(1, D)
    return p


if __name__ == "__main__":
    D = 32          # embedding_size
    STEP = 2        # GNN propagation steps
    N_ITEMS = 50
    MAX_SEQ = 8
    B, L = 2, 8     # batch of sessions, padded session length

    params = init_params(jax.random.PRNGKey(0), D, N_ITEMS, MAX_SEQ)

    # Synthetic batched session graph (node 0 is the padding node, as produced
    # by gnn_transform: x/batch get a prepended zero entry, aliases start at 1).
    x = jnp.array([0, 3, 7, 9, 2, 5, 11, 13], dtype=jnp.int32)
    batch = jnp.array([0, 0, 0, 0, 1, 1, 1, 1], dtype=jnp.int32)
    alias_inputs = jnp.array([[1, 2, 1, 3, 0, 0, 0, 0],
                              [4, 5, 6, 7, 4, 0, 0, 0]], dtype=jnp.int32)
    item_seq_len = jnp.array([4, 5], dtype=jnp.int32)
    edge_index = jnp.array([[1, 2, 1, 4, 5, 6, 7],
                            [2, 1, 3, 5, 6, 7, 4]], dtype=jnp.int32)

    out = sgnnhn_forward(params, x, edge_index, batch, alias_inputs, item_seq_len, STEP)
    out = jax.block_until_ready(out)

    ref_same = reference_forward(params, x, edge_index, batch, alias_inputs,
                                 item_seq_len, STEP)           # same padded/bf16 math
    ref_f32 = reference_forward_f32(params, x, edge_index, batch, alias_inputs,
                                    item_seq_len, STEP)        # module-faithful fp32

    assert out.shape == (B, D)
    assert bool(jnp.all(jnp.isfinite(out)))
    assert jnp.allclose(out, ref_same, atol=1e-2, rtol=1e-2), (out, ref_same)
    assert jnp.allclose(out, ref_f32, atol=8e-2, rtol=8e-2), (out, ref_f32)
    print("KERNEL_OK")
</pallas_src>

<mosaic_0001>
module attributes {stable_mosaic.version = 11 : i64} {
  func.func @_sgnnhn_kernel(%arg0: memref<8x128xf32, #tpu.memory_space<vmem>>, %arg1: memref<8x128xf32, #tpu.memory_space<vmem>>, %arg2: memref<8x8xbf16, #tpu.memory_space<vmem>>, %arg3: memref<8x8xbf16, #tpu.memory_space<vmem>>, %arg4: memref<8x8xbf16, #tpu.memory_space<vmem>>, %arg5: memref<8x8xbf16, #tpu.memory_space<vmem>>, %arg6: memref<16x8xbf16, #tpu.memory_space<vmem>>, %arg7: memref<8x128xf32, #tpu.memory_space<vmem>>, %arg8: memref<2x8xf32, #tpu.memory_space<vmem>>, %arg9: memref<2x8xf32, #tpu.memory_space<vmem>>, %arg10: memref<2x8xf32, #tpu.memory_space<vmem>>, %arg11: memref<128x256xbf16, #tpu.memory_space<vmem>>, %arg12: memref<1x256xf32, #tpu.memory_space<vmem>>, %arg13: memref<128x384xbf16, #tpu.memory_space<vmem>>, %arg14: memref<128x384xbf16, #tpu.memory_space<vmem>>, %arg15: memref<1x384xf32, #tpu.memory_space<vmem>>, %arg16: memref<128x384xbf16, #tpu.memory_space<vmem>>, %arg17: memref<1x384xf32, #tpu.memory_space<vmem>>, %arg18: memref<128x128xbf16, #tpu.memory_space<vmem>>, %arg19: memref<128x128xbf16, #tpu.memory_space<vmem>>, %arg20: memref<128x128xbf16, #tpu.memory_space<vmem>>, %arg21: memref<1x128xf32, #tpu.memory_space<vmem>>, %arg22: memref<1x128xf32, #tpu.memory_space<vmem>>, %arg23: memref<128x128xbf16, #tpu.memory_space<vmem>>, %arg24: memref<128x128xbf16, #tpu.memory_space<vmem>>, %arg25: memref<1x128xf32, #tpu.memory_space<vmem>>, %arg26: memref<2x128xf32, #tpu.memory_space<vmem>>) attributes {dimension_semantics = [], scalar_prefetch = 0 : i64, scratch_operands = 0 : i64, tpu.core_type = #tpu.core_type<tc>} {
    %c0 = arith.constant 0 : index
    %c0_0 = arith.constant 0 : index
    %0 = vector.load %arg11[%c0, %c0_0] : memref<128x256xbf16, #tpu.memory_space<vmem>>, vector<128x256xbf16>
    %c0_1 = arith.constant 0 : index
    %c0_2 = arith.constant 0 : index
    %1 = vector.load %arg12[%c0_1, %c0_2] : memref<1x256xf32, #tpu.memory_space<vmem>>, vector<1x256xf32>
    %c0_3 = arith.constant 0 : index
    %c0_4 = arith.constant 0 : index
    %2 = vector.load %arg13[%c0_3, %c0_4] : memref<128x384xbf16, #tpu.memory_space<vmem>>, vector<128x384xbf16>
    %c0_5 = arith.constant 0 : index
    %c0_6 = arith.constant 0 : index
    %3 = vector.load %arg14[%c0_5, %c0_6] : memref<128x384xbf16, #tpu.memory_space<vmem>>, vector<128x384xbf16>
    %c0_7 = arith.constant 0 : index
    %c0_8 = arith.constant 0 : index
    %4 = vector.load %arg15[%c0_7, %c0_8] : memref<1x384xf32, #tpu.memory_space<vmem>>, vector<1x384xf32>
    %c0_9 = arith.constant 0 : index
    %c0_10 = arith.constant 0 : index
    %5 = vector.load %arg16[%c0_9, %c0_10] : memref<128x384xbf16, #tpu.memory_space<vmem>>, vector<128x384xbf16>
    %c0_11 = arith.constant 0 : index
    %c0_12 = arith.constant 0 : index
    %6 = vector.load %arg17[%c0_11, %c0_12] : memref<1x384xf32, #tpu.memory_space<vmem>>, vector<1x384xf32>
    %c0_13 = arith.constant 0 : index
    %c0_14 = arith.constant 0 : index
    %7 = vector.load %arg18[%c0_13, %c0_14] : memref<128x128xbf16, #tpu.memory_space<vmem>>, vector<128x128xbf16>
    %c0_15 = arith.constant 0 : index
    %c0_16 = arith.constant 0 : index
    %8 = vector.load %arg19[%c0_15, %c0_16] : memref<128x128xbf16, #tpu.memory_space<vmem>>, vector<128x128xbf16>
    %c0_17 = arith.constant 0 : index
    %c0_18 = arith.constant 0 : index
    %9 = vector.load %arg20[%c0_17, %c0_18] : memref<128x128xbf16, #tpu.memory_space<vmem>>, vector<128x128xbf16>
    %c0_19 = arith.constant 0 : index
    %c0_20 = arith.constant 0 : index
    %10 = vector.load %arg21[%c0_19, %c0_20] : memref<1x128xf32, #tpu.memory_space<vmem>>, vector<1x128xf32>
    %c0_21 = arith.constant 0 : index
    %c0_22 = arith.constant 0 : index
    %11 = vector.load %arg22[%c0_21, %c0_22] : memref<1x128xf32, #tpu.memory_space<vmem>>, vector<1x128xf32>
    %c0_23 = arith.constant 0 : index
    %c0_24 = arith.constant 0 : index
    %12 = vector.load %arg23[%c0_23, %c0_24] : memref<128x128xbf16, #tpu.memory_space<vmem>>, vector<128x128xbf16>
    %c0_25 = arith.constant 0 : index
    %c0_26 = arith.constant 0 : index
    %13 = vector.load %arg24[%c0_25, %c0_26] : memref<128x128xbf16, #tpu.memory_space<vmem>>, vector<128x128xbf16>
    %c0_27 = arith.constant 0 : index
    %c0_28 = arith.constant 0 : index
    %14 = vector.load %arg25[%c0_27, %c0_28] : memref<1x128xf32, #tpu.memory_space<vmem>>, vector<1x128xf32>
    %c0_29 = arith.constant 0 : index
    %c0_30 = arith.constant 0 : index
    %15 = vector.load %arg0[%c0_29, %c0_30] : memref<8x128xf32, #tpu.memory_space<vmem>>, vector<8x128xf32>
    %c0_31 = arith.constant 0 : index
    %c0_32 = arith.constant 0 : index
    %16 = vector.load %arg1[%c0_31, %c0_32] : memref<8x128xf32, #tpu.memory_space<vmem>>, vector<8x128xf32>
    %c0_33 = arith.constant 0 : index
    %c0_34 = arith.constant 0 : index
    %17 = vector.load %arg2[%c0_33, %c0_34] : memref<8x8xbf16, #tpu.memory_space<vmem>>, vector<8x8xbf16>
    %c0_35 = arith.constant 0 : index
    %c0_36 = arith.constant 0 : index
    %18 = vector.load %arg3[%c0_35, %c0_36] : memref<8x8xbf16, #tpu.memory_space<vmem>>, vector<8x8xbf16>
    %c0_37 = arith.constant 0 : index
    %c0_38 = arith.constant 0 : index
    %19 = vector.load %arg4[%c0_37, %c0_38] : memref<8x8xbf16, #tpu.memory_space<vmem>>, vector<8x8xbf16>
    %c0_39 = arith.constant 0 : index
    %c0_40 = arith.constant 0 : index
    %20 = vector.load %arg5[%c0_39, %c0_40] : memref<8x8xbf16, #tpu.memory_space<vmem>>, vector<8x8xbf16>
    %c0_41 = arith.constant 0 : index
    %c0_42 = arith.constant 0 : index
    %21 = vector.load %arg6[%c0_41, %c0_42] : memref<16x8xbf16, #tpu.memory_space<vmem>>, vector<16x8xbf16>
    %c0_43 = arith.constant 0 : index
    %c0_44 = arith.constant 0 : index
    %22 = vector.load %arg7[%c0_43, %c0_44] : memref<8x128xf32, #tpu.memory_space<vmem>>, vector<8x128xf32>
    %c0_45 = arith.constant 0 : index
    %c0_46 = arith.constant 0 : index
    %23 = vector.load %arg8[%c0_45, %c0_46] : memref<2x8xf32, #tpu.memory_space<vmem>>, vector<2x8xf32>
    %c0_47 = arith.constant 0 : index
    %c0_48 = arith.constant 0 : index
    %24 = vector.load %arg9[%c0_47, %c0_48] : memref<2x8xf32, #tpu.memory_space<vmem>>, vector<2x8xf32>
    %c0_49 = arith.constant 0 : index
    %c0_50 = arith.constant 0 : index
    %25 = vector.load %arg10[%c0_49, %c0_50] : memref<2x8xf32, #tpu.memory_space<vmem>>, vector<2x8xf32>
    %26 = arith.extf %19 : vector<8x8xbf16> to vector<8x8xf32>
    %cst = arith.constant 0.000000e+00 : f32
    %27 = vector.broadcast %cst : f32 to vector<8x8xf32>
    %28 = arith.cmpf ogt, %26, %27 : vector<8x8xf32>
    %cst_51 = arith.constant dense<0.000000e+00> : vector<8xf32>
    %29 = vector.multi_reduction <add>, %26, %cst_51 [1] : vector<8x8xf32> to vector<8xf32>
    %30 = vector.shape_cast %29 : vector<8xf32> to vector<8x1xf32>
    %cst_52 = arith.constant 0.000000e+00 : f32
    %31 = vector.broadcast %cst_52 : f32 to vector<8x1xf32>
    %32 = arith.cmpf ogt, %30, %31 : vector<8x1xf32>
    %33 = arith.extui %32 : vector<8x1xi1> to vector<8x1xi32>
    %34 = arith.sitofp %33 : vector<8x1xi32> to vector<8x1xf32>
    %c0_i32 = arith.constant 0 : i32
    %c2_i32 = arith.constant 2 : i32
    %35 = arith.addi %c0_i32, %c2_i32 : i32
    %c1_i32 = arith.constant 1 : i32
    %36:2 = scf.for %arg27 = %c0_i32 to %35 step %c1_i32 iter_args(%arg28 = %15, %arg29 = %16) -> (vector<8x128xf32>, vector<8x128xf32>)  : i32 {
      %112 = arith.truncf %arg28 : vector<8x128xf32> to vector<8x128xbf16>
      %cst_69 = arith.constant dense<0.000000e+00> : vector<8x256xf32>
      %113 = tpu.matmul %112, %0, %cst_69 {dimension_numbers = #tpu.dot_dimension_numbers<[1], [0], [0], [1], [0, 0, 1, 1], [], []>} : vector<8x128xbf16>, vector<128x256xbf16>, vector<8x256xf32> -> vector<8x256xf32>
      %114 = vector.broadcast %1 : vector<1x256xf32> to vector<8x256xf32>
      %115 = arith.addf %113, %114 : vector<8x256xf32>
      %116 = vector.extract_strided_slice %115 {offsets = [0, 0], sizes = [8, 128], strides = [1, 1]} : vector<8x256xf32> to vector<8x128xf32>
      %117 = arith.truncf %116 : vector<8x128xf32> to vector<8x128xbf16>
      %cst_70 = arith.constant dense<0.000000e+00> : vector<8x128xf32>
      %118 = tpu.matmul %17, %117, %cst_70 {dimension_numbers = #tpu.dot_dimension_numbers<[1], [0], [0], [1], [0, 0, 1, 1], [], []>} : vector<8x8xbf16>, vector<8x128xbf16>, vector<8x128xf32> -> vector<8x128xf32>
      %119 = arith.truncf %118 : vector<8x128xf32> to vector<8x128xbf16>
      %120 = vector.extract_strided_slice %115 {offsets = [0, 128], sizes = [8, 128], strides = [1, 1]} : vector<8x256xf32> to vector<8x128xf32>
      %121 = arith.truncf %120 : vector<8x128xf32> to vector<8x128xbf16>
      %cst_71 = arith.constant dense<0.000000e+00> : vector<8x128xf32>
      %122 = tpu.matmul %18, %121, %cst_71 {dimension_numbers = #tpu.dot_dimension_numbers<[1], [0], [0], [1], [0, 0, 1, 1], [], []>} : vector<8x8xbf16>, vector<8x128xbf16>, vector<8x128xf32> -> vector<8x128xf32>
      %123 = arith.truncf %122 : vector<8x128xf32> to vector<8x128xbf16>
      %cst_72 = arith.constant dense<0.000000e+00> : vector<8x384xf32>
      %124 = tpu.matmul %119, %2, %cst_72 {dimension_numbers = #tpu.dot_dimension_numbers<[1], [0], [0], [1], [0, 0, 1, 1], [], []>} : vector<8x128xbf16>, vector<128x384xbf16>, vector<8x384xf32> -> vector<8x384xf32>
      %cst_73 = arith.constant dense<0.000000e+00> : vector<8x384xf32>
      %125 = tpu.matmul %123, %3, %cst_73 {dimension_numbers = #tpu.dot_dimension_numbers<[1], [0], [0], [1], [0, 0, 1, 1], [], []>} : vector<8x128xbf16>, vector<128x384xbf16>, vector<8x384xf32> -> vector<8x384xf32>
      %126 = arith.addf %124, %125 : vector<8x384xf32>
      %127 = vector.broadcast %4 : vector<1x384xf32> to vector<8x384xf32>
      %128 = arith.addf %126, %127 : vector<8x384xf32>
      %cst_74 = arith.constant dense<0.000000e+00> : vector<8x384xf32>
      %129 = tpu.matmul %112, %5, %cst_74 {dimension_numbers = #tpu.dot_dimension_numbers<[1], [0], [0], [1], [0, 0, 1, 1], [], []>} : vector<8x128xbf16>, vector<128x384xbf16>, vector<8x384xf32> -> vector<8x384xf32>
      %130 = vector.broadcast %6 : vector<1x384xf32> to vector<8x384xf32>
      %131 = arith.addf %129, %130 : vector<8x384xf32>
      %132 = vector.extract_strided_slice %128 {offsets = [0, 0], sizes = [8, 128], strides = [1, 1]} : vector<8x384xf32> to vector<8x128xf32>
      %133 = vector.extract_strided_slice %131 {offsets = [0, 0], sizes = [8, 128], strides = [1, 1]} : vector<8x384xf32> to vector<8x128xf32>
      %134 = arith.addf %132, %133 : vector<8x128xf32>
      %135 = arith.negf %134 : vector<8x128xf32>
      %136 = math.exp %135 : vector<8x128xf32>
      %cst_75 = arith.constant 1.000000e+00 : f32
      %137 = vector.broadcast %cst_75 : f32 to vector<8x128xf32>
      %138 = arith.addf %137, %136 : vector<8x128xf32>
      %139 = arith.divf %137, %138 : vector<8x128xf32>
      %140 = vector.extract_strided_slice %128 {offsets = [0, 128], sizes = [8, 128], strides = [1, 1]} : vector<8x384xf32> to vector<8x128xf32>
      %141 = vector.extract_strided_slice %131 {offsets = [0, 128], sizes = [8, 128], strides = [1, 1]} : vector<8x384xf32> to vector<8x128xf32>
      %142 = arith.addf %140, %141 : vector<8x128xf32>
      %143 = arith.negf %142 : vector<8x128xf32>
      %144 = math.exp %143 : vector<8x128xf32>
      %cst_76 = arith.constant 1.000000e+00 : f32
      %145 = vector.broadcast %cst_76 : f32 to vector<8x128xf32>
      %146 = arith.addf %145, %144 : vector<8x128xf32>
      %147 = arith.divf %145, %146 : vector<8x128xf32>
      %148 = vector.extract_strided_slice %128 {offsets = [0, 256], sizes = [8, 128], strides = [1, 1]} : vector<8x384xf32> to vector<8x128xf32>
      %149 = vector.extract_strided_slice %131 {offsets = [0, 256], sizes = [8, 128], strides = [1, 1]} : vector<8x384xf32> to vector<8x128xf32>
      %150 = arith.mulf %139, %149 : vector<8x128xf32>
      %151 = arith.addf %148, %150 : vector<8x128xf32>
      %152 = math.tanh %151 : vector<8x128xf32>
      %cst_77 = arith.constant 1.000000e+00 : f32
      %153 = vector.broadcast %cst_77 : f32 to vector<8x128xf32>
      %154 = arith.subf %153, %147 : vector<8x128xf32>
      %155 = arith.mulf %154, %arg28 : vector<8x128xf32>
      %156 = arith.mulf %147, %152 : vector<8x128xf32>
      %157 = arith.addf %155, %156 : vector<8x128xf32>
      %158 = arith.truncf %arg29 : vector<8x128xf32> to vector<8x128xbf16>
      %cst_78 = arith.constant dense<0.000000e+00> : vector<8x128xf32>
      %159 = tpu.matmul %19, %158, %cst_78 {dimension_numbers = #tpu.dot_dimension_numbers<[1], [0], [0], [1], [0, 0, 1, 1], [], []>} : vector<8x8xbf16>, vector<8x128xbf16>, vector<8x128xf32> -> vector<8x128xf32>
      %160 = arith.mulf %157, %159 : vector<8x128xf32>
      %cst_79 = arith.constant dense<0.000000e+00> : vector<8xf32>
      %161 = vector.multi_reduction <add>, %160, %cst_79 [1] : vector<8x128xf32> to vector<8xf32>
      %162 = vector.shape_cast %161 : vector<8xf32> to vector<8x1xf32>
      %cst_80 = arith.constant 0.176776692 : f32
      %163 = vector.broadcast %cst_80 : f32 to vector<8x1xf32>
      %164 = arith.mulf %162, %163 : vector<8x1xf32>
      %165 = arith.negf %164 : vector<8x1xf32>
      %166 = math.exp %165 : vector<8x1xf32>
      %cst_81 = arith.constant 1.000000e+00 : f32
      %167 = vector.broadcast %cst_81 : f32 to vector<8x1xf32>
      %168 = arith.addf %167, %166 : vector<8x1xf32>
      %169 = arith.divf %167, %168 : vector<8x1xf32>
      %cst_82 = arith.constant 1.000000e+00 : f32
      %170 = vector.broadcast %cst_82 : f32 to vector<8x1xf32>
      %171 = arith.subf %170, %169 : vector<8x1xf32>
      %172 = vector.broadcast %171 : vector<8x1xf32> to vector<8x128xf32>
      %173 = arith.mulf %172, %157 : vector<8x128xf32>
      %174 = vector.broadcast %169 : vector<8x1xf32> to vector<8x128xf32>
      %175 = arith.mulf %174, %159 : vector<8x128xf32>
      %176 = arith.addf %173, %175 : vector<8x128xf32>
      %177 = arith.mulf %176, %159 : vector<8x128xf32>
      %cst_83 = arith.constant dense<0.000000e+00> : vector<8xf32>
      %178 = vector.multi_reduction <add>, %177, %cst_83 [1] : vector<8x128xf32> to vector<8xf32>
      %179 = vector.shape_cast %178 : vector<8xf32> to vector<8x1xf32>
      %cst_84 = arith.constant -1.000000e+30 : f32
      %180 = vector.shape_cast %179 : vector<8x1xf32> to vector<8x1xf32>
      %181 = vector.broadcast %180 : vector<8x1xf32> to vector<8x8xf32>
      %182 = vector.broadcast %cst_84 : f32 to vector<8x8xf32>
      %183 = arith.select %28, %181, %182 : vector<8x8xi1>, vector<8x8xf32>
      %cst_85 = arith.constant dense<0xFF800000> : vector<8xf32>
      %184 = vector.multi_reduction <maximumf>, %183, %cst_85 [0] : vector<8x8xf32> to vector<8xf32>
      %185 = vector.shape_cast %184 : vector<8xf32> to vector<1x8xf32>
      %186 = vector.broadcast %185 : vector<1x8xf32> to vector<8x8xf32>
      %187 = arith.mulf %26, %186 : vector<8x8xf32>
      %cst_86 = arith.constant dense<0.000000e+00> : vector<8xf32>
      %188 = vector.multi_reduction <add>, %187, %cst_86 [1] : vector<8x8xf32> to vector<8xf32>
      %189 = vector.shape_cast %188 : vector<8xf32> to vector<8x1xf32>
      %190 = arith.subf %179, %189 : vector<8x1xf32>
      %191 = math.exp %190 : vector<8x1xf32>
      %192 = arith.mulf %34, %191 : vector<8x1xf32>
      %193 = vector.broadcast %192 : vector<8x1xf32> to vector<8x8xf32>
      %194 = arith.mulf %26, %193 : vector<8x8xf32>
      %cst_87 = arith.constant dense<0.000000e+00> : vector<8xf32>
      %195 = vector.multi_reduction <add>, %194, %cst_87 [0] : vector<8x8xf32> to vector<8xf32>
      %196 = vector.shape_cast %195 : vector<8xf32> to vector<1x8xf32>
      %197 = vector.broadcast %196 : vector<1x8xf32> to vector<8x8xf32>
      %198 = arith.mulf %26, %197 : vector<8x8xf32>
      %cst_88 = arith.constant dense<0.000000e+00> : vector<8xf32>
      %199 = vector.multi_reduction <add>, %198, %cst_88 [1] : vector<8x8xf32> to vector<8xf32>
      %200 = vector.shape_cast %199 : vector<8xf32> to vector<8x1xf32>
      %cst_89 = arith.constant 1.000000e-30 : f32
      %201 = vector.broadcast %cst_89 : f32 to vector<8x1xf32>
      %202 = arith.addf %200, %201 : vector<8x1xf32>
      %203 = tpu.reciprocal %202 {approx = true} : vector<8x1xf32> -> vector<8x1xf32>
      %204 = arith.mulf %192, %203 : vector<8x1xf32>
      %205 = vector.broadcast %204 : vector<8x1xf32> to vector<8x128xf32>
      %206 = arith.mulf %205, %176 : vector<8x128xf32>
      %207 = arith.truncf %206 : vector<8x128xf32> to vector<8x128xbf16>
      %cst_90 = arith.constant dense<0.000000e+00> : vector<8x128xf32>
      %208 = tpu.matmul %20, %207, %cst_90 {dimension_numbers = #tpu.dot_dimension_numbers<[1], [0], [0], [1], [0, 0, 1, 1], [], []>} : vector<8x8xbf16>, vector<8x128xbf16>, vector<8x128xf32> -> vector<8x128xf32>
      scf.yield %176, %208 : vector<8x128xf32>, vector<8x128xf32>
    }
    %37 = arith.truncf %36#0 : vector<8x128xf32> to vector<8x128xbf16>
    %cst_53 = arith.constant dense<0.000000e+00> : vector<16x128xf32>
    %38 = tpu.matmul %21, %37, %cst_53 {dimension_numbers = #tpu.dot_dimension_numbers<[1], [0], [0], [1], [0, 0, 1, 1], [], []>} : vector<16x8xbf16>, vector<8x128xbf16>, vector<16x128xf32> -> vector<16x128xf32>
    %39 = vector.shape_cast %38 : vector<16x128xf32> to vector<2x8x128xf32>
    %40 = vector.shape_cast %22 : vector<8x128xf32> to vector<1x8x128xf32>
    %41 = vector.shape_cast %23 : vector<2x8xf32> to vector<2x8x1xf32>
    %42 = vector.broadcast %40 : vector<1x8x128xf32> to vector<2x8x128xf32>
    %43 = vector.broadcast %41 : vector<2x8x1xf32> to vector<2x8x128xf32>
    %44 = arith.mulf %42, %43 : vector<2x8x128xf32>
    %45 = arith.addf %39, %44 : vector<2x8x128xf32>
    %46 = vector.shape_cast %24 : vector<2x8xf32> to vector<2x8x1xf32>
    %47 = vector.broadcast %46 : vector<2x8x1xf32> to vector<2x8x128xf32>
    %48 = arith.mulf %47, %45 : vector<2x8x128xf32>
    %cst_54 = arith.constant dense<0.000000e+00> : vector<2x128xf32>
    %49 = vector.multi_reduction <add>, %48, %cst_54 [1] : vector<2x8x128xf32> to vector<2x128xf32>
    %50 = arith.truncf %49 : vector<2x128xf32> to vector<2x128xbf16>
    %cst_55 = arith.constant dense<0.000000e+00> : vector<2x128xf32>
    %51 = tpu.matmul %50, %7, %cst_55 {dimension_numbers = #tpu.dot_dimension_numbers<[1], [0], [0], [1], [0, 0, 1, 1], [], []>} : vector<2x128xbf16>, vector<128x128xbf16>, vector<2x128xf32> -> vector<2x128xf32>
    %52 = vector.shape_cast %45 : vector<2x8x128xf32> to vector<16x128xf32>
    %53 = arith.truncf %52 : vector<16x128xf32> to vector<16x128xbf16>
    %cst_56 = arith.constant dense<0.000000e+00> : vector<16x128xf32>
    %54 = tpu.matmul %53, %8, %cst_56 {dimension_numbers = #tpu.dot_dimension_numbers<[1], [0], [0], [1], [0, 0, 1, 1], [], []>} : vector<16x128xbf16>, vector<128x128xbf16>, vector<16x128xf32> -> vector<16x128xf32>
    %55 = vector.shape_cast %54 : vector<16x128xf32> to vector<2x8x128xf32>
    %56 = vector.extract_strided_slice %36#1 {offsets = [0, 0], sizes = [2, 128], strides = [1, 1]} : vector<8x128xf32> to vector<2x128xf32>
    %57 = arith.truncf %56 : vector<2x128xf32> to vector<2x128xbf16>
    %cst_57 = arith.constant dense<0.000000e+00> : vector<2x128xf32>
    %58 = tpu.matmul %57, %9, %cst_57 {dimension_numbers = #tpu.dot_dimension_numbers<[1], [0], [0], [1], [0, 0, 1, 1], [], []>} : vector<2x128xbf16>, vector<128x128xbf16>, vector<2x128xf32> -> vector<2x128xf32>
    %59 = vector.shape_cast %51 : vector<2x128xf32> to vector<2x1x128xf32>
    %60 = vector.broadcast %59 : vector<2x1x128xf32> to vector<2x8x128xf32>
    %61 = arith.addf %60, %55 : vector<2x8x128xf32>
    %62 = vector.shape_cast %58 : vector<2x128xf32> to vector<2x1x128xf32>
    %63 = vector.broadcast %62 : vector<2x1x128xf32> to vector<2x8x128xf32>
    %64 = arith.addf %61, %63 : vector<2x8x128xf32>
    %65 = vector.shape_cast %10 : vector<1x128xf32> to vector<1x1x128xf32>
    %66 = vector.broadcast %65 : vector<1x1x128xf32> to vector<2x8x128xf32>
    %67 = arith.addf %64, %66 : vector<2x8x128xf32>
    %68 = arith.negf %67 : vector<2x8x128xf32>
    %69 = math.exp %68 : vector<2x8x128xf32>
    %cst_58 = arith.constant 1.000000e+00 : f32
    %70 = vector.broadcast %cst_58 : f32 to vector<2x8x128xf32>
    %71 = arith.addf %70, %69 : vector<2x8x128xf32>
    %72 = arith.divf %70, %71 : vector<2x8x128xf32>
    %73 = vector.shape_cast %11 : vector<1x128xf32> to vector<1x1x128xf32>
    %74 = vector.broadcast %73 : vector<1x1x128xf32> to vector<2x8x128xf32>
    %75 = arith.mulf %72, %74 : vector<2x8x128xf32>
    %cst_59 = arith.constant dense<0.000000e+00> : vector<2x8xf32>
    %76 = vector.multi_reduction <add>, %75, %cst_59 [2] : vector<2x8x128xf32> to vector<2x8xf32>
    %77 = vector.shape_cast %76 : vector<2x8xf32> to vector<2x8x1xf32>
    %78 = vector.broadcast %77 : vector<2x8x1xf32> to vector<2x8x128xf32>
    %79 = arith.mulf %78, %45 : vector<2x8x128xf32>
    %80 = vector.shape_cast %25 : vector<2x8xf32> to vector<2x8x1xf32>
    %81 = vector.broadcast %80 : vector<2x8x1xf32> to vector<2x8x128xf32>
    %82 = arith.mulf %79, %81 : vector<2x8x128xf32>
    %cst_60 = arith.constant dense<0.000000e+00> : vector<2x128xf32>
    %83 = vector.multi_reduction <add>, %82, %cst_60 [1] : vector<2x8x128xf32> to vector<2x128xf32>
    %84 = arith.truncf %83 : vector<2x128xf32> to vector<2x128xbf16>
    %cst_61 = arith.constant dense<0.000000e+00> : vector<2x128xf32>
    %85 = tpu.matmul %84, %12, %cst_61 {dimension_numbers = #tpu.dot_dimension_numbers<[1], [0], [0], [1], [0, 0, 1, 1], [], []>} : vector<2x128xbf16>, vector<128x128xbf16>, vector<2x128xf32> -> vector<2x128xf32>
    %cst_62 = arith.constant dense<0.000000e+00> : vector<2x128xf32>
    %86 = tpu.matmul %50, %13, %cst_62 {dimension_numbers = #tpu.dot_dimension_numbers<[1], [0], [0], [1], [0, 0, 1, 1], [], []>} : vector<2x128xbf16>, vector<128x128xbf16>, vector<2x128xf32> -> vector<2x128xf32>
    %87 = arith.addf %85, %86 : vector<2x128xf32>
    %88 = vector.broadcast %14 : vector<1x128xf32> to vector<2x128xf32>
    %89 = arith.addf %87, %88 : vector<2x128xf32>
    %90 = tpu.iota {dimensions = array<i32: 1>} : vector<1x128xi32>
    %c32_i32 = arith.constant 32 : i32
    %91 = vector.broadcast %c32_i32 : i32 to vector<1x128xi32>
    %92 = arith.cmpi slt, %90, %91 : vector<1x128xi32>
    %93 = arith.extui %92 : vector<1x128xi1> to vector<1x128xi32>
    %94 = arith.sitofp %93 : vector<1x128xi32> to vector<1x128xf32>
    %cst_63 = arith.constant dense<0.000000e+00> : vector<2xf32>
    %95 = vector.multi_reduction <add>, %89, %cst_63 [1] : vector<2x128xf32> to vector<2xf32>
    %96 = vector.shape_cast %95 : vector<2xf32> to vector<2x1xf32>
    %cst_64 = arith.constant 3.125000e-02 : f32
    %97 = vector.broadcast %cst_64 : f32 to vector<2x1xf32>
    %98 = arith.mulf %96, %97 : vector<2x1xf32>
    %99 = vector.broadcast %98 : vector<2x1xf32> to vector<2x128xf32>
    %100 = arith.subf %89, %99 : vector<2x128xf32>
    %101 = vector.broadcast %94 : vector<1x128xf32> to vector<2x128xf32>
    %102 = arith.mulf %100, %101 : vector<2x128xf32>
    %103 = arith.mulf %102, %102 : vector<2x128xf32>
    %cst_65 = arith.constant dense<0.000000e+00> : vector<2xf32>
    %104 = vector.multi_reduction <add>, %103, %cst_65 [1] : vector<2x128xf32> to vector<2xf32>
    %105 = vector.shape_cast %104 : vector<2xf32> to vector<2x1xf32>
    %cst_66 = arith.constant 1.000000e-24 : f32
    %106 = vector.broadcast %cst_66 : f32 to vector<2x1xf32>
    %107 = arith.addf %105, %106 : vector<2x1xf32>
    %108 = math.rsqrt %107 : vector<2x1xf32>
    %109 = vector.broadcast %108 : vector<2x1xf32> to vector<2x128xf32>
    %110 = arith.mulf %102, %109 : vector<2x128xf32>
    %c0_67 = arith.constant 0 : index
    %c0_68 = arith.constant 0 : index
    %111 = vector.load %arg26[%c0_67, %c0_68] : memref<2x128xf32, #tpu.memory_space<vmem>>, vector<2x128xf32>
    tpu.vector_store %arg26[%c0_67, %c0_68], %110 {strides = array<i32>} : memref<2x128xf32, #tpu.memory_space<vmem>>, vector<2x128xf32>,
    return
  }
}

</mosaic_0001>

<llo_original>
// kernel: tpu_custom_call.1
$region0: #{tpu_custom_call.1}
  #allocation0 [shape = 'u32[]', space=smem, size = 0x4, offset = 0x4, fixed_abs, tag = 'smem constant byte address 0x4 - core index']
  #allocation1 [shape = 'u32[144,128]{1,0:T(1,128)}', space=vmem, size = 0x12000, scoped, tag = 'internal scratch']
  %s0 = inlined_call_operand.vmem [shape: f32[8,128], index: 0, kind: input, shape index: {}]
  %s1 = inlined_call_operand.hbm [shape: f32[8,128], index: 1, kind: input, shape index: {}]
  %s2 = inlined_call_operand.hbm [shape: bf16[8,8], index: 2, kind: input, shape index: {}]
  %s3 = inlined_call_operand.hbm [shape: bf16[8,8], index: 3, kind: input, shape index: {}]
  %s4 = inlined_call_operand.hbm [shape: bf16[8,8], index: 4, kind: input, shape index: {}]
  %s5 = inlined_call_operand.hbm [shape: bf16[8,8], index: 5, kind: input, shape index: {}]
  %s6 = inlined_call_operand.vmem [shape: bf16[16,8], index: 6, kind: input, shape index: {}]
  %s7 = inlined_call_operand.vmem [shape: f32[8,128], index: 7, kind: input, shape index: {}]
  %s8 = inlined_call_operand.hbm [shape: f32[2,8], index: 8, kind: input, shape index: {}]
  %s9 = inlined_call_operand.hbm [shape: f32[2,8], index: 9, kind: input, shape index: {}]
  %s10 = inlined_call_operand.hbm [shape: f32[2,8], index: 10, kind: input, shape index: {}]
  %s11 = inlined_call_operand.hbm [shape: bf16[128,256], index: 11, kind: input, shape index: {}]
  %s12 = inlined_call_operand.hbm [shape: f32[1,256], index: 12, kind: input, shape index: {}]
  %s13 = inlined_call_operand.hbm [shape: bf16[128,384], index: 13, kind: input, shape index: {}]
  %s14 = inlined_call_operand.hbm [shape: bf16[128,384], index: 14, kind: input, shape index: {}]
  %s15 = inlined_call_operand.hbm [shape: f32[1,384], index: 15, kind: input, shape index: {}]
  %s16 = inlined_call_operand.hbm [shape: bf16[128,384], index: 16, kind: input, shape index: {}]
  %s17 = inlined_call_operand.hbm [shape: f32[1,384], index: 17, kind: input, shape index: {}]
  %s18 = inlined_call_operand.vmem [shape: bf16[128,128], index: 18, kind: input, shape index: {}]
  %s19 = inlined_call_operand.hbm [shape: bf16[128,128], index: 19, kind: input, shape index: {}]
  %s20 = inlined_call_operand.hbm [shape: bf16[128,128], index: 20, kind: input, shape index: {}]
  %s21 = inlined_call_operand.vmem [shape: f32[1,128], index: 21, kind: input, shape index: {}]
  %s22 = inlined_call_operand.vmem [shape: f32[1,128], index: 22, kind: input, shape index: {}]
  %s23 = inlined_call_operand.hbm [shape: bf16[128,128], index: 23, kind: input, shape index: {}]
  %s24 = inlined_call_operand.hbm [shape: bf16[128,128], index: 24, kind: input, shape index: {}]
  %s25 = inlined_call_operand.vmem [shape: f32[1,128], index: 25, kind: input, shape index: {}]
  %s26 = inlined_call_operand.hbm [shape: f32[2,128], index: 26, kind: output, shape index: {}]
  %s27 = sld [smem:[#allocation0]]
  $region197: #{tpu_custom_call.1} parent=0
    _
  %s29 = ssub.s32 1, %s27
  %s30 = scalar_select 0, %s29, %s27
  $region1: #{tpu_custom_call.1} parent=0
    #allocation2 [shape = 'u8[4096]{0}', space=vmem, size = 0x1000, scoped, tag = 'input window, operand 1, single buffered']
    #allocation3 [shape = 's32[1]{0}', space=sflag, size = 0x4, scoped, tag = 'scoped memory for tpu_custom_call.1']
    #allocation4 [shape = 's32[1]{0}', space=sflag, size = 0x4, scoped, tag = 'scoped memory for tpu_custom_call.1']
    #allocation5 [shape = 'u8[2048]{0}', space=vmem, size = 0x800, scoped, tag = 'input window, operand 2, single buffered']
    #allocation6 [shape = 's32[1]{0}', space=sflag, size = 0x4, scoped, tag = 'scoped memory for tpu_custom_call.1']
    #allocation7 [shape = 'u8[2048]{0}', space=vmem, size = 0x800, scoped, tag = 'input window, operand 3, single buffered']
    #allocation8 [shape = 'u8[2048]{0}', space=vmem, size = 0x800, scoped, tag = 'input window, operand 4, single buffered']
    #allocation9 [shape = 's32[1]{0}', space=sflag, size = 0x4, scoped, tag = 'scoped memory for tpu_custom_call.1']
    #allocation10 [shape = 'u8[2048]{0}', space=vmem, size = 0x800, scoped, tag = 'input window, operand 5, single buffered']
    #allocation11 [shape = 'u8[1024]{0}', space=vmem, size = 0x400, scoped, tag = 'input window, operand 8, single buffered']
    #allocation12 [shape = 's32[1]{0}', space=sflag, size = 0x4, scoped, tag = 'scoped memory for tpu_custom_call.1']
    #allocation13 [shape = 'u8[1024]{0}', space=vmem, size = 0x400, scoped, tag = 'input window, operand 9, single buffered']
    #allocation14 [shape = 'u8[1024]{0}', space=vmem, size = 0x400, scoped, tag = 'input window, operand 10, single buffered']
    #allocation15 [shape = 's32[1]{0}', space=sflag, size = 0x4, scoped, tag = 'scoped memory for tpu_custom_call.1']
    #allocation16 [shape = 'u8[65536]{0}', space=vmem, size = 0x10000, scoped, tag = 'input window, operand 11, single buffered']
    #allocation17 [shape = 'u8[1024]{0}', space=vmem, size = 0x400, scoped, tag = 'input window, operand 12, single buffered']
    #allocation18 [shape = 's32[1]{0}', space=sflag, size = 0x4, scoped, tag = 'scoped memory for tpu_custom_call.1']
    #allocation19 [shape = 'u8[98304]{0}', space=vmem, size = 0x18000, scoped, tag = 'input window, operand 13, single buffered']
    #allocation20 [shape = 'u8[98304]{0}', space=vmem, size = 0x18000, scoped, tag = 'input window, operand 14, single buffered']
    #allocation21 [shape = 's32[1]{0}', space=sflag, size = 0x4, scoped, tag = 'scoped memory for tpu_custom_call.1']
    #allocation22 [shape = 'u8[1536]{0}', space=vmem, size = 0x800, scoped, tag = 'input window, operand 15, single buffered']
    #allocation23 [shape = 'u8[98304]{0}', space=vmem, size = 0x18000, scoped, tag = 'input window, operand 16, single buffered']
    #allocation24 [shape = 's32[1]{0}', space=sflag, size = 0x4, scoped, tag = 'scoped memory for tpu_custom_call.1']
    #allocation25 [shape = 'u8[1536]{0}', space=vmem, size = 0x800, scoped, tag = 'input window, operand 17, single buffered']
    #allocation26 [shape = 'u8[32768]{0}', space=vmem, size = 0x8000, scoped, tag = 'input window, operand 19, single buffered']
    #allocation27 [shape = 's32[1]{0}', space=sflag, size = 0x4, scoped, tag = 'scoped memory for tpu_custom_call.1']
    #allocation28 [shape = 'u8[32768]{0}', space=vmem, size = 0x8000, scoped, tag = 'input window, operand 20, single buffered']
    #allocation29 [shape = 'u8[32768]{0}', space=vmem, size = 0x8000, scoped, tag = 'input window, operand 23, single buffered']
    #allocation30 [shape = 's32[1]{0}', space=sflag, size = 0x4, scoped, tag = 'scoped memory for tpu_custom_call.1']
    #allocation31 [shape = 'u8[32768]{0}', space=vmem, size = 0x8000, scoped, tag = 'input window, operand 24, single buffered']
    #allocation32 [shape = 'u8[1024]{0}', space=vmem, size = 0x400, scoped, tag = 'output window, operand 0, single buffered']
    %31 = vsyncpa [#allocation3], 0
    %32 = vsyncpa [#allocation6], 0
    %33 = vsyncpa [#allocation9], 0
    %34 = vsyncpa [#allocation12], 0
    %35 = vsyncpa [#allocation15], 0
    %36 = vsyncpa [#allocation18], 0
    %37 = vsyncpa [#allocation21], 0
    %38 = vsyncpa [#allocation24], 0
    %39 = vsyncpa [#allocation27], 0
    %40 = vsyncpa [#allocation30], 0
    %41 = vsyncpa [#allocation4], 0
    // Predicated region
    $region2: #{tpu_custom_call.1} parent=1 // pred_check
      _
    $region3: #{tpu_custom_call.1} parent=1 // pred_check_branch
      %43 = sbr.rel (0) target = $region5
    $region4: #{tpu_custom_call.1} parent=1 // pred_region
      _
    $region5: #{tpu_custom_call.1} parent=1 // pred_fallthru
      _
    // Predicated region
    $region6: #{tpu_custom_call.1} parent=1 // pred_check
      _
    $region7: #{tpu_custom_call.1} parent=1 // pred_check_branch
      %45 = sbr.rel (0) target = $region9
    $region8: #{tpu_custom_call.1} parent=1 // pred_region
      %s47 = ssub.s32 128, 128
      %48 = vsyncadd [#allocation3], %s47
      %s50 = sshll.u32 [#allocation2], 4
      %s51 = int_to_ptr.vmem [resolvable:$true] %s50
      %53 = dma.hbm_to_vmem [thread:$0]  %s1, 128, %s51, [#allocation3]
    $region9: #{tpu_custom_call.1} parent=1 // pred_fallthru
      _
    // Predicated region
    $region10: #{tpu_custom_call.1} parent=1 // pred_check
      _
    $region11: #{tpu_custom_call.1} parent=1 // pred_check_branch
      %55 = sbr.rel (0) target = $region13
    $region12: #{tpu_custom_call.1} parent=1 // pred_region
      %s57 = ssub.s32 64, 64
      %58 = vsyncadd [#allocation6], %s57
      %s60 = sshll.u32 [#allocation5], 4
      %s61 = int_to_ptr.vmem [resolvable:$true] %s60
      %63 = dma.hbm_to_vmem [thread:$0]  %s2, 64, %s61, [#allocation6]
    $region13: #{tpu_custom_call.1} parent=1 // pred_fallthru
      _
    // Predicated region
    $region14: #{tpu_custom_call.1} parent=1 // pred_check
      _
    $region15: #{tpu_custom_call.1} parent=1 // pred_check_branch
      %65 = sbr.rel (0) target = $region17
    $region16: #{tpu_custom_call.1} parent=1 // pred_region
      %s67 = ssub.s32 64, 64
      %68 = vsyncadd [#allocation6], %s67
      %s70 = sshll.u32 [#allocation7], 4
      %s71 = int_to_ptr.vmem [resolvable:$true] %s70
      %73 = dma.hbm_to_vmem [thread:$0]  %s3, 64, %s71, [#allocation6]
    $region17: #{tpu_custom_call.1} parent=1 // pred_fallthru
      _
    // Predicated region
    $region18: #{tpu_custom_call.1} parent=1 // pred_check
      _
    $region19: #{tpu_custom_call.1} parent=1 // pred_check_branch
      %75 = sbr.rel (0) target = $region21
    $region20: #{tpu_custom_call.1} parent=1 // pred_region
      %s77 = ssub.s32 64, 64
      %78 = vsyncadd [#allocation9], %s77
      %s80 = sshll.u32 [#allocation8], 4
      %s81 = int_to_ptr.vmem [resolvable:$true] %s80
      %83 = dma.hbm_to_vmem [thread:$0]  %s4, 64, %s81, [#allocation9]
    $region21: #{tpu_custom_call.1} parent=1 // pred_fallthru
      _
    // Predicated region
    $region22: #{tpu_custom_call.1} parent=1 // pred_check
      _
    $region23: #{tpu_custom_call.1} parent=1 // pred_check_branch
      %85 = sbr.rel (0) target = $region25
    $region24: #{tpu_custom_call.1} parent=1 // pred_region
      %s87 = ssub.s32 64, 64
      %88 = vsyncadd [#allocation9], %s87
      %s90 = sshll.u32 [#allocation10], 4
      %s91 = int_to_ptr.vmem [resolvable:$true] %s90
      %93 = dma.hbm_to_vmem [thread:$0]  %s5, 64, %s91, [#allocation9]
    $region25: #{tpu_custom_call.1} parent=1 // pred_fallthru
      _
    // Predicated region
    $region26: #{tpu_custom_call.1} parent=1 // pred_check
      _
    $region27: #{tpu_custom_call.1} parent=1 // pred_check_branch
      %95 = sbr.rel (0) target = $region29
    $region28: #{tpu_custom_call.1} parent=1 // pred_region
      _
    $region29: #{tpu_custom_call.1} parent=1 // pred_fallthru
      _
    // Predicated region
    $region30: #{tpu_custom_call.1} parent=1 // pred_check
      _
    $region31: #{tpu_custom_call.1} parent=1 // pred_check_branch
      %97 = sbr.rel (0) target = $region33
    $region32: #{tpu_custom_call.1} parent=1 // pred_region
      _
    $region33: #{tpu_custom_call.1} parent=1 // pred_fallthru
      _
    // Predicated region
    $region34: #{tpu_custom_call.1} parent=1 // pred_check
      _
    $region35: #{tpu_custom_call.1} parent=1 // pred_check_branch
      %99 = sbr.rel (0) target = $region37
    $region36: #{tpu_custom_call.1} parent=1 // pred_region
      %s101 = ssub.s32 32, 32
      %102 = vsyncadd [#allocation12], %s101
      %s104 = sshll.u32 [#allocation11], 4
      %s105 = int_to_ptr.vmem [resolvable:$true] %s104
      %107 = dma.hbm_to_vmem [thread:$0]  %s8, 32, %s105, [#allocation12]
    $region37: #{tpu_custom_call.1} parent=1 // pred_fallthru
      _
    // Predicated region
    $region38: #{tpu_custom_call.1} parent=1 // pred_check
      _
    $region39: #{tpu_custom_call.1} parent=1 // pred_check_branch
      %109 = sbr.rel (0) target = $region41
    $region40: #{tpu_custom_call.1} parent=1 // pred_region
      %s111 = ssub.s32 32, 32
      %112 = vsyncadd [#allocation12], %s111
      %s114 = sshll.u32 [#allocation13], 4
      %s115 = int_to_ptr.vmem [resolvable:$true] %s114
      %117 = dma.hbm_to_vmem [thread:$0]  %s9, 32, %s115, [#allocation12]
    $region41: #{tpu_custom_call.1} parent=1 // pred_fallthru
      _
    // Predicated region
    $region42: #{tpu_custom_call.1} parent=1 // pred_check
      _
    $region43: #{tpu_custom_call.1} parent=1 // pred_check_branch
      %119 = sbr.rel (0) target = $region45
    $region44: #{tpu_custom_call.1} parent=1 // pred_region
      %s121 = ssub.s32 32, 32
      %122 = vsyncadd [#allocation15], %s121
      %s124 = sshll.u32 [#allocation14], 4
      %s125 = int_to_ptr.vmem [resolvable:$true] %s124
      %127 = dma.hbm_to_vmem [thread:$0]  %s10, 32, %s125, [#allocation15]
    $region45: #{tpu_custom_call.1} parent=1 // pred_fallthru
      _
    // Predicated region
    $region46: #{tpu_custom_call.1} parent=1 // pred_check
      _
    $region47: #{tpu_custom_call.1} parent=1 // pred_check_branch
      %129 = sbr.rel (0) target = $region49
    $region48: #{tpu_custom_call.1} parent=1 // pred_region
      %s131 = ssub.s32 2048, 2048
      %132 = vsyncadd [#allocation15], %s131
      %s133 = sshll.u32 [#allocation16], 4
      %s134 = int_to_ptr.vmem [resolvable:$true] %s133
      %139 = dma.hbm_to_vmem [thread:$0]  %s11, 2048, %s134, [#allocation15], 128, 128, 8
    $region49: #{tpu_custom_call.1} parent=1 // pred_fallthru
      _
    // Predicated region
    $region50: #{tpu_custom_call.1} parent=1 // pred_check
      _
    $region51: #{tpu_custom_call.1} parent=1 // pred_check_branch
      %141 = sbr.rel (0) target = $region53
    $region52: #{tpu_custom_call.1} parent=1 // pred_region
      %s143 = ssub.s32 32, 32
      %144 = vsyncadd [#allocation18], %s143
      %s146 = sshll.u32 [#allocation17], 4
      %s147 = int_to_ptr.vmem [resolvable:$true] %s146
      %149 = dma.hbm_to_vmem [thread:$0]  %s12, 32, %s147, [#allocation18]
    $region53: #{tpu_custom_call.1} parent=1 // pred_fallthru
      _
    // Predicated region
    $region54: #{tpu_custom_call.1} parent=1 // pred_check
      _
    $region55: #{tpu_custom_call.1} parent=1 // pred_check_branch
      %151 = sbr.rel (0) target = $region57
    $region56: #{tpu_custom_call.1} parent=1 // pred_region
      %s153 = ssub.s32 3072, 3072
      %154 = vsyncadd [#allocation18], %s153
      %s155 = sshll.u32 [#allocation19], 4
      %s156 = int_to_ptr.vmem [resolvable:$true] %s155
      %161 = dma.hbm_to_vmem [thread:$0]  %s13, 3072, %s156, [#allocation18], 192, 192, 12
    $region57: #{tpu_custom_call.1} parent=1 // pred_fallthru
      _
    // Predicated region
    $region58: #{tpu_custom_call.1} parent=1 // pred_check
      _
    $region59: #{tpu_custom_call.1} parent=1 // pred_check_branch
      %163 = sbr.rel (0) target = $region61
    $region60: #{tpu_custom_call.1} parent=1 // pred_region
      %s165 = ssub.s32 3072, 3072
      %166 = vsyncadd [#allocation21], %s165
      %s167 = sshll.u32 [#allocation20], 4
      %s168 = int_to_ptr.vmem [resolvable:$true] %s167
      %173 = dma.hbm_to_vmem [thread:$0]  %s14, 3072, %s168, [#allocation21], 192, 192, 12
    $region61: #{tpu_custom_call.1} parent=1 // pred_fallthru
      _
    // Predicated region
    $region62: #{tpu_custom_call.1} parent=1 // pred_check
      _
    $region63: #{tpu_custom_call.1} parent=1 // pred_check_branch
      %175 = sbr.rel (0) target = $region65
    $region64: #{tpu_custom_call.1} parent=1 // pred_region
      %s177 = ssub.s32 48, 48
      %178 = vsyncadd [#allocation21], %s177
      %s180 = sshll.u32 [#allocation22], 4
      %s181 = int_to_ptr.vmem [resolvable:$true] %s180
      %183 = dma.hbm_to_vmem [thread:$0]  %s15, 48, %s181, [#allocation21]
    $region65: #{tpu_custom_call.1} parent=1 // pred_fallthru
      _
    // Predicated region
    $region66: #{tpu_custom_call.1} parent=1 // pred_check
      _
    $region67: #{tpu_custom_call.1} parent=1 // pred_check_branch
      %185 = sbr.rel (0) target = $region69
    $region68: #{tpu_custom_call.1} parent=1 // pred_region
      %s187 = ssub.s32 3072, 3072
      %188 = vsyncadd [#allocation24], %s187
      %s189 = sshll.u32 [#allocation23], 4
      %s190 = int_to_ptr.vmem [resolvable:$true] %s189
      %195 = dma.hbm_to_vmem [thread:$0]  %s16, 3072, %s190, [#allocation24], 192, 192, 12
    $region69: #{tpu_custom_call.1} parent=1 // pred_fallthru
      _
    // Predicated region
    $region70: #{tpu_custom_call.1} parent=1 // pred_check
      _
    $region71: #{tpu_custom_call.1} parent=1 // pred_check_branch
      %197 = sbr.rel (0) target = $region73
    $region72: #{tpu_custom_call.1} parent=1 // pred_region
      %s199 = ssub.s32 48, 48
      %200 = vsyncadd [#allocation24], %s199
      %s202 = sshll.u32 [#allocation25], 4
      %s203 = int_to_ptr.vmem [resolvable:$true] %s202
      %205 = dma.hbm_to_vmem [thread:$0]  %s17, 48, %s203, [#allocation24]
    $region73: #{tpu_custom_call.1} parent=1 // pred_fallthru
      _
    // Predicated region
    $region74: #{tpu_custom_call.1} parent=1 // pred_check
      _
    $region75: #{tpu_custom_call.1} parent=1 // pred_check_branch
      %207 = sbr.rel (0) target = $region77
    $region76: #{tpu_custom_call.1} parent=1 // pred_region
      _
    $region77: #{tpu_custom_call.1} parent=1 // pred_fallthru
      _
    // Predicated region
    $region78: #{tpu_custom_call.1} parent=1 // pred_check
      _
    $region79: #{tpu_custom_call.1} parent=1 // pred_check_branch
      %209 = sbr.rel (0) target = $region81
    $region80: #{tpu_custom_call.1} parent=1 // pred_region
      %s211 = ssub.s32 1024, 1024
      %212 = vsyncadd [#allocation27], %s211
      %s213 = sshll.u32 [#allocation26], 4
      %s214 = int_to_ptr.vmem [resolvable:$true] %s213
      %219 = dma.hbm_to_vmem [thread:$0]  %s19, 1024, %s214, [#allocation27], 64, 64, 4
    $region81: #{tpu_custom_call.1} parent=1 // pred_fallthru
      _
    // Predicated region
    $region82: #{tpu_custom_call.1} parent=1 // pred_check
      _
    $region83: #{tpu_custom_call.1} parent=1 // pred_check_branch
      %221 = sbr.rel (0) target = $region85
    $region84: #{tpu_custom_call.1} parent=1 // pred_region
      %s223 = ssub.s32 1024, 1024
      %224 = vsyncadd [#allocation27], %s223
      %s225 = sshll.u32 [#allocation28], 4
      %s226 = int_to_ptr.vmem [resolvable:$true] %s225
      %231 = dma.hbm_to_vmem [thread:$0]  %s20, 1024, %s226, [#allocation27], 64, 64, 4
    $region85: #{tpu_custom_call.1} parent=1 // pred_fallthru
      _
    // Predicated region
    $region86: #{tpu_custom_call.1} parent=1 // pred_check
      _
    $region87: #{tpu_custom_call.1} parent=1 // pred_check_branch
      %233 = sbr.rel (0) target = $region89
    $region88: #{tpu_custom_call.1} parent=1 // pred_region
      _
    $region89: #{tpu_custom_call.1} parent=1 // pred_fallthru
      _
    // Predicated region
    $region90: #{tpu_custom_call.1} parent=1 // pred_check
      _
    $region91: #{tpu_custom_call.1} parent=1 // pred_check_branch
      %235 = sbr.rel (0) target = $region93
    $region92: #{tpu_custom_call.1} parent=1 // pred_region
      _
    $region93: #{tpu_custom_call.1} parent=1 // pred_fallthru
      _
    // Predicated region
    $region94: #{tpu_custom_call.1} parent=1 // pred_check
      _
    $region95: #{tpu_custom_call.1} parent=1 // pred_check_branch
      %237 = sbr.rel (0) target = $region97
    $region96: #{tpu_custom_call.1} parent=1 // pred_region
      %s239 = ssub.s32 1024, 1024
      %240 = vsyncadd [#allocation30], %s239
      %s241 = sshll.u32 [#allocation29], 4
      %s242 = int_to_ptr.vmem [resolvable:$true] %s241
      %247 = dma.hbm_to_vmem [thread:$0]  %s23, 1024, %s242, [#allocation30], 64, 64, 4
    $region97: #{tpu_custom_call.1} parent=1 // pred_fallthru
      _
    // Predicated region
    $region98: #{tpu_custom_call.1} parent=1 // pred_check
      _
    $region99: #{tpu_custom_call.1} parent=1 // pred_check_branch
      %249 = sbr.rel (0) target = $region101
    $region100: #{tpu_custom_call.1} parent=1 // pred_region
      %s251 = ssub.s32 1024, 1024
      %252 = vsyncadd [#allocation30], %s251
      %s253 = sshll.u32 [#allocation31], 4
      %s254 = int_to_ptr.vmem [resolvable:$true] %s253
      %259 = dma.hbm_to_vmem [thread:$0]  %s24, 1024, %s254, [#allocation30], 64, 64, 4
    $region101: #{tpu_custom_call.1} parent=1 // pred_fallthru
      _
    // Predicated region
    $region102: #{tpu_custom_call.1} parent=1 // pred_check
      _
    $region103: #{tpu_custom_call.1} parent=1 // pred_check_branch
      %261 = sbr.rel (0) target = $region105
    $region104: #{tpu_custom_call.1} parent=1 // pred_region
      _
    $region105: #{tpu_custom_call.1} parent=1 // pred_fallthru
      _
    // Predicated region
    $region106: #{tpu_custom_call.1} parent=1 // pred_check
      _
    $region107: #{tpu_custom_call.1} parent=1 // pred_check_branch
      %263 = sbr.rel (0) target = $region109
    $region108: #{tpu_custom_call.1} parent=1 // pred_region
      %264 = dma.done [#allocation3], 128
    $region109: #{tpu_custom_call.1} parent=1 // pred_fallthru
      _
    // Predicated region
    $region110: #{tpu_custom_call.1} parent=1 // pred_check
      _
    $region111: #{tpu_custom_call.1} parent=1 // pred_check_branch
      %266 = sbr.rel (0) target = $region113
    $region112: #{tpu_custom_call.1} parent=1 // pred_region
      %267 = dma.done [#allocation6], 64
    $region113: #{tpu_custom_call.1} parent=1 // pred_fallthru
      _
    // Predicated region
    $region114: #{tpu_custom_call.1} parent=1 // pred_check
      _
    $region115: #{tpu_custom_call.1} parent=1 // pred_check_branch
      %269 = sbr.rel (0) target = $region117
    $region116: #{tpu_custom_call.1} parent=1 // pred_region
      %270 = dma.done [#allocation6], 64
    $region117: #{tpu_custom_call.1} parent=1 // pred_fallthru
      _
    // Predicated region
    $region118: #{tpu_custom_call.1} parent=1 // pred_check
      _
    $region119: #{tpu_custom_call.1} parent=1 // pred_check_branch
      %272 = sbr.rel (0) target = $region121
    $region120: #{tpu_custom_call.1} parent=1 // pred_region
      %273 = dma.done [#allocation9], 64
    $region121: #{tpu_custom_call.1} parent=1 // pred_fallthru
      _
    // Predicated region
    $region122: #{tpu_custom_call.1} parent=1 // pred_check
      _
    $region123: #{tpu_custom_call.1} parent=1 // pred_check_branch
      %275 = sbr.rel (0) target = $region125
    $region124: #{tpu_custom_call.1} parent=1 // pred_region
      %276 = dma.done [#allocation9], 64
    $region125: #{tpu_custom_call.1} parent=1 // pred_fallthru
      _
    // Predicated region
    $region126: #{tpu_custom_call.1} parent=1 // pred_check
      _
    $region127: #{tpu_custom_call.1} parent=1 // pred_check_branch
      %278 = sbr.rel (0) target = $region129
    $region128: #{tpu_custom_call.1} parent=1 // pred_region
      %279 = dma.done [#allocation12], 32
    $region129: #{tpu_custom_call.1} parent=1 // pred_fallthru
      _
    // Predicated region
    $region130: #{tpu_custom_call.1} parent=1 // pred_check
      _
    $region131: #{tpu_custom_call.1} parent=1 // pred_check_branch
      %281 = sbr.rel (0) target = $region133
    $region132: #{tpu_custom_call.1} parent=1 // pred_region
      %282 = dma.done [#allocation12], 32
    $region133: #{tpu_custom_call.1} parent=1 // pred_fallthru
      _
    // Predicated region
    $region134: #{tpu_custom_call.1} parent=1 // pred_check
      _
    $region135: #{tpu_custom_call.1} parent=1 // pred_check_branch
      %284 = sbr.rel (0) target = $region137
    $region136: #{tpu_custom_call.1} parent=1 // pred_region
      %285 = dma.done [#allocation15], 32
    $region137: #{tpu_custom_call.1} parent=1 // pred_fallthru
      _
    // Predicated region
    $region138: #{tpu_custom_call.1} parent=1 // pred_check
      _
    $region139: #{tpu_custom_call.1} parent=1 // pred_check_branch
      %287 = sbr.rel (0) target = $region141
    $region140: #{tpu_custom_call.1} parent=1 // pred_region
      %288 = dma.done [#allocation15], 2048
    $region141: #{tpu_custom_call.1} parent=1 // pred_fallthru
      _
    // Predicated region
    $region142: #{tpu_custom_call.1} parent=1 // pred_check
      _
    $region143: #{tpu_custom_call.1} parent=1 // pred_check_branch
      %290 = sbr.rel (0) target = $region145
    $region144: #{tpu_custom_call.1} parent=1 // pred_region
      %291 = dma.done [#allocation18], 32
    $region145: #{tpu_custom_call.1} parent=1 // pred_fallthru
      _
    // Predicated region
    $region146: #{tpu_custom_call.1} parent=1 // pred_check
      _
    $region147: #{tpu_custom_call.1} parent=1 // pred_check_branch
      %293 = sbr.rel (0) target = $region149
    $region148: #{tpu_custom_call.1} parent=1 // pred_region
      %294 = dma.done [#allocation18], 3072
    $region149: #{tpu_custom_call.1} parent=1 // pred_fallthru
      _
    // Predicated region
    $region150: #{tpu_custom_call.1} parent=1 // pred_check
      _
    $region151: #{tpu_custom_call.1} parent=1 // pred_check_branch
      %296 = sbr.rel (0) target = $region153
    $region152: #{tpu_custom_call.1} parent=1 // pred_region
      %297 = dma.done [#allocation21], 3072
    $region153: #{tpu_custom_call.1} parent=1 // pred_fallthru
      _
    // Predicated region
    $region154: #{tpu_custom_call.1} parent=1 // pred_check
      _
    $region155: #{tpu_custom_call.1} parent=1 // pred_check_branch
      %299 = sbr.rel (0) target = $region157
    $region156: #{tpu_custom_call.1} parent=1 // pred_region
      %300 = dma.done [#allocation21], 48
    $region157: #{tpu_custom_call.1} parent=1 // pred_fallthru
      _
    // Predicated region
    $region158: #{tpu_custom_call.1} parent=1 // pred_check
      _
    $region159: #{tpu_custom_call.1} parent=1 // pred_check_branch
      %302 = sbr.rel (0) target = $region161
    $region160: #{tpu_custom_call.1} parent=1 // pred_region
      %303 = dma.done [#allocation24], 3072
    $region161: #{tpu_custom_call.1} parent=1 // pred_fallthru
      _
    // Predicated region
    $region162: #{tpu_custom_call.1} parent=1 // pred_check
      _
    $region163: #{tpu_custom_call.1} parent=1 // pred_check_branch
      %305 = sbr.rel (0) target = $region165
    $region164: #{tpu_custom_call.1} parent=1 // pred_region
      %306 = dma.done [#allocation24], 48
    $region165: #{tpu_custom_call.1} parent=1 // pred_fallthru
      _
    // Predicated region
    $region166: #{tpu_custom_call.1} parent=1 // pred_check
      _
    $region167: #{tpu_custom_call.1} parent=1 // pred_check_branch
      %308 = sbr.rel (0) target = $region169
    $region168: #{tpu_custom_call.1} parent=1 // pred_region
      %309 = dma.done [#allocation27], 1024
    $region169: #{tpu_custom_call.1} parent=1 // pred_fallthru
      _
    // Predicated region
    $region170: #{tpu_custom_call.1} parent=1 // pred_check
      _
    $region171: #{tpu_custom_call.1} parent=1 // pred_check_branch
      %311 = sbr.rel (0) target = $region173
    $region172: #{tpu_custom_call.1} parent=1 // pred_region
      %312 = dma.done [#allocation27], 1024
    $region173: #{tpu_custom_call.1} parent=1 // pred_fallthru
      _
    // Predicated region
    $region174: #{tpu_custom_call.1} parent=1 // pred_check
      _
    $region175: #{tpu_custom_call.1} parent=1 // pred_check_branch
      %314 = sbr.rel (0) target = $region177
    $region176: #{tpu_custom_call.1} parent=1 // pred_region
      %315 = dma.done [#allocation30], 1024
    $region177: #{tpu_custom_call.1} parent=1 // pred_fallthru
      _
    // Predicated region
    $region178: #{tpu_custom_call.1} parent=1 // pred_check
      _
    $region179: #{tpu_custom_call.1} parent=1 // pred_check_branch
      %317 = sbr.rel (0) target = $region181
    $region180: #{tpu_custom_call.1} parent=1 // pred_region
      %318 = dma.done [#allocation30], 1024
    $region181: #{tpu_custom_call.1} parent=1 // pred_fallthru
      _
    %v320 = vld [vmem:[#allocation16] sm:$0xff]
    %v321 = vld [vmem:[#allocation16 + $0x8] sm:$0xff]
    %v322 = vld [vmem:[#allocation16 + $0x10] sm:$0xff]
    %v323 = vld [vmem:[#allocation16 + $0x18] sm:$0xff]
    %v324 = vld [vmem:[#allocation16 + $0x20] sm:$0xff]
    %v325 = vld [vmem:[#allocation16 + $0x28] sm:$0xff]
    %v326 = vld [vmem:[#allocation16 + $0x30] sm:$0xff]
    %v327 = vld [vmem:[#allocation16 + $0x38] sm:$0xff]
    %v328 = vld [vmem:[#allocation16 + $0x40] sm:$0xff]
    %v329 = vld [vmem:[#allocation16 + $0x48] sm:$0xff]
    %v330 = vld [vmem:[#allocation16 + $0x50] sm:$0xff]
    %v331 = vld [vmem:[#allocation16 + $0x58] sm:$0xff]
    %v332 = vld [vmem:[#allocation16 + $0x60] sm:$0xff]
    %v333 = vld [vmem:[#allocation16 + $0x68] sm:$0xff]
    %v334 = vld [vmem:[#allocation16 + $0x70] sm:$0xff]
    %v335 = vld [vmem:[#allocation16 + $0x78] sm:$0xff]
    %v336 = vld [vmem:[#allocation17] sm:$0x3]
    %v337 = vld [vmem:[#allocation19] sm:$0xff]
    %v338 = vld [vmem:[#allocation19 + $0x8] sm:$0xf]
    %v339 = vld [vmem:[#allocation19 + $0xc] sm:$0xff]
    %v340 = vld [vmem:[#allocation19 + $0x14] sm:$0xf]
    %v341 = vld [vmem:[#allocation19 + $0x18] sm:$0xff]
    %v342 = vld [vmem:[#allocation19 + $0x20] sm:$0xf]
    %v343 = vld [vmem:[#allocation19 + $0x24] sm:$0xff]
    %v344 = vld [vmem:[#allocation19 + $0x2c] sm:$0xf]
    %v345 = vld [vmem:[#allocation19 + $0x30] sm:$0xff]
    %v346 = vld [vmem:[#allocation19 + $0x38] sm:$0xf]
    %v347 = vld [vmem:[#allocation19 + $0x3c] sm:$0xff]
    %v348 = vld [vmem:[#allocation19 + $0x44] sm:$0xf]
    %v349 = vld [vmem:[#allocation19 + $0x48] sm:$0xff]
    %v350 = vld [vmem:[#allocation19 + $0x50] sm:$0xf]
    %v351 = vld [vmem:[#allocation19 + $0x54] sm:$0xff]
    %v352 = vld [vmem:[#allocation19 + $0x5c] sm:$0xf]
    %v353 = vld [vmem:[#allocation19 + $0x60] sm:$0xff]
    %v354 = vld [vmem:[#allocation19 + $0x68] sm:$0xf]
    %v355 = vld [vmem:[#allocation19 + $0x6c] sm:$0xff]
    %v356 = vld [vmem:[#allocation19 + $0x74] sm:$0xf]
    %v357 = vld [vmem:[#allocation19 + $0x78] sm:$0xff]
    %v358 = vld [vmem:[#allocation19 + $0x80] sm:$0xf]
    %v359 = vld [vmem:[#allocation19 + $0x84] sm:$0xff]
    %v360 = vld [vmem:[#allocation19 + $0x8c] sm:$0xf]
    %v361 = vld [vmem:[#allocation19 + $0x90] sm:$0xff]
    %v362 = vld [vmem:[#allocation19 + $0x98] sm:$0xf]
    %v363 = vld [vmem:[#allocation19 + $0x9c] sm:$0xff]
    %v364 = vld [vmem:[#allocation19 + $0xa4] sm:$0xf]
    %v365 = vld [vmem:[#allocation19 + $0xa8] sm:$0xff]
    %v366 = vld [vmem:[#allocation19 + $0xb0] sm:$0xf]
    %v367 = vld [vmem:[#allocation19 + $0xb4] sm:$0xff]
    %v368 = vld [vmem:[#allocation19 + $0xbc] sm:$0xf]
    %v369 = vld [vmem:[#allocation20] sm:$0xff]
    %v370 = vld [vmem:[#allocation20 + $0x8] sm:$0xf]
    %v371 = vld [vmem:[#allocation20 + $0xc] sm:$0xff]
    %v372 = vld [vmem:[#allocation20 + $0x14] sm:$0xf]
    %v373 = vld [vmem:[#allocation20 + $0x18] sm:$0xff]
    %v374 = vld [vmem:[#allocation20 + $0x20] sm:$0xf]
    %v375 = vld [vmem:[#allocation20 + $0x24] sm:$0xff]
    %v376 = vld [vmem:[#allocation20 + $0x2c] sm:$0xf]
    %v377 = vld [vmem:[#allocation20 + $0x30] sm:$0xff]
    %v378 = vld [vmem:[#allocation20 + $0x38] sm:$0xf]
    %v379 = vld [vmem:[#allocation20 + $0x3c] sm:$0xff]
    %v380 = vld [vmem:[#allocation20 + $0x44] sm:$0xf]
    %v381 = vld [vmem:[#allocation20 + $0x48] sm:$0xff]
    %v382 = vld [vmem:[#allocation20 + $0x50] sm:$0xf]
    %v383 = vld [vmem:[#allocation20 + $0x54] sm:$0xff]
    %v384 = vld [vmem:[#allocation20 + $0x5c] sm:$0xf]
    %v385 = vld [vmem:[#allocation20 + $0x60] sm:$0xff]
    %v386 = vld [vmem:[#allocation20 + $0x68] sm:$0xf]
    %v387 = vld [vmem:[#allocation20 + $0x6c] sm:$0xff]
    %v388 = vld [vmem:[#allocation20 + $0x74] sm:$0xf]
    %v389 = vld [vmem:[#allocation20 + $0x78] sm:$0xff]
    %v390 = vld [vmem:[#allocation20 + $0x80] sm:$0xf]
    %v391 = vld [vmem:[#allocation20 + $0x84] sm:$0xff]
    %v392 = vld [vmem:[#allocation20 + $0x8c] sm:$0xf]
    %v393 = vld [vmem:[#allocation20 + $0x90] sm:$0xff]
    %v394 = vld [vmem:[#allocation20 + $0x98] sm:$0xf]
    %v395 = vld [vmem:[#allocation20 + $0x9c] sm:$0xff]
    %v396 = vld [vmem:[#allocation20 + $0xa4] sm:$0xf]
    %v397 = vld [vmem:[#allocation20 + $0xa8] sm:$0xff]
    %v398 = vld [vmem:[#allocation20 + $0xb0] sm:$0xf]
    %v399 = vld [vmem:[#allocation20 + $0xb4] sm:$0xff]
    %v400 = vld [vmem:[#allocation20 + $0xbc] sm:$0xf]
    %v401 = vld [vmem:[#allocation22] sm:$0x7]
    %v402 = vld [vmem:[#allocation23] sm:$0xff]
    %v403 = vld [vmem:[#allocation23 + $0x8] sm:$0xf]
    %v404 = vld [vmem:[#allocation23 + $0xc] sm:$0xff]
    %v405 = vld [vmem:[#allocation23 + $0x14] sm:$0xf]
    %v406 = vld [vmem:[#allocation23 + $0x18] sm:$0xff]
    %v407 = vld [vmem:[#allocation23 + $0x20] sm:$0xf]
    %v408 = vld [vmem:[#allocation23 + $0x24] sm:$0xff]
    %v409 = vld [vmem:[#allocation23 + $0x2c] sm:$0xf]
    %v410 = vld [vmem:[#allocation23 + $0x30] sm:$0xff]
    %v411 = vld [vmem:[#allocation23 + $0x38] sm:$0xf]
    %v412 = vld [vmem:[#allocation23 + $0x3c] sm:$0xff]
    %v413 = vld [vmem:[#allocation23 + $0x44] sm:$0xf]
    %v414 = vld [vmem:[#allocation23 + $0x48] sm:$0xff]
    %v415 = vld [vmem:[#allocation23 + $0x50] sm:$0xf]
    %v416 = vld [vmem:[#allocation23 + $0x54] sm:$0xff]
    %v417 = vld [vmem:[#allocation23 + $0x5c] sm:$0xf]
    %v418 = vld [vmem:[#allocation23 + $0x60] sm:$0xff]
    %v419 = vld [vmem:[#allocation23 + $0x68] sm:$0xf]
    %v420 = vld [vmem:[#allocation23 + $0x6c] sm:$0xff]
    %v421 = vld [vmem:[#allocation23 + $0x74] sm:$0xf]
    %v422 = vld [vmem:[#allocation23 + $0x78] sm:$0xff]
    %v423 = vld [vmem:[#allocation23 + $0x80] sm:$0xf]
    %v424 = vld [vmem:[#allocation23 + $0x84] sm:$0xff]
    %v425 = vld [vmem:[#allocation23 + $0x8c] sm:$0xf]
    %v426 = vld [vmem:[#allocation23 + $0x90] sm:$0xff]
    %v427 = vld [vmem:[#allocation23 + $0x98] sm:$0xf]
    %v428 = vld [vmem:[#allocation23 + $0x9c] sm:$0xff]
    %v429 = vld [vmem:[#allocation23 + $0xa4] sm:$0xf]
    %v430 = vld [vmem:[#allocation23 + $0xa8] sm:$0xff]
    %v431 = vld [vmem:[#allocation23 + $0xb0] sm:$0xf]
    %v432 = vld [vmem:[#allocation23 + $0xb4] sm:$0xff]
    %v433 = vld [vmem:[#allocation23 + $0xbc] sm:$0xf]
    %v434 = vld [vmem:[#allocation25] sm:$0x7]
    %v435 = vld [vmem:[%s18] sm:$0xf]
    %v436 = vld [vmem:[%s18 + $0x4] sm:$0xf]
    %v437 = vld [vmem:[%s18 + $0x8] sm:$0xf]
    %v438 = vld [vmem:[%s18 + $0xc] sm:$0xf]
    %v439 = vld [vmem:[%s18 + $0x10] sm:$0xf]
    %v440 = vld [vmem:[%s18 + $0x14] sm:$0xf]
    %v441 = vld [vmem:[%s18 + $0x18] sm:$0xf]
    %v442 = vld [vmem:[%s18 + $0x1c] sm:$0xf]
    %v443 = vld [vmem:[%s18 + $0x20] sm:$0xf]
    %v444 = vld [vmem:[%s18 + $0x24] sm:$0xf]
    %v445 = vld [vmem:[%s18 + $0x28] sm:$0xf]
    %v446 = vld [vmem:[%s18 + $0x2c] sm:$0xf]
    %v447 = vld [vmem:[%s18 + $0x30] sm:$0xf]
    %v448 = vld [vmem:[%s18 + $0x34] sm:$0xf]
    %v449 = vld [vmem:[%s18 + $0x38] sm:$0xf]
    %v450 = vld [vmem:[%s18 + $0x3c] sm:$0xf]
    %v451 = vld [vmem:[#allocation26] sm:$0xf]
    %v452 = vld [vmem:[#allocation26 + $0x4] sm:$0xf]
    %v453 = vld [vmem:[#allocation26 + $0x8] sm:$0xf]
    %v454 = vld [vmem:[#allocation26 + $0xc] sm:$0xf]
    %v455 = vld [vmem:[#allocation26 + $0x10] sm:$0xf]
    %v456 = vld [vmem:[#allocation26 + $0x14] sm:$0xf]
    %v457 = vld [vmem:[#allocation26 + $0x18] sm:$0xf]
    %v458 = vld [vmem:[#allocation26 + $0x1c] sm:$0xf]
    %v459 = vld [vmem:[#allocation26 + $0x20] sm:$0xf]
    %v460 = vld [vmem:[#allocation26 + $0x24] sm:$0xf]
    %v461 = vld [vmem:[#allocation26 + $0x28] sm:$0xf]
    %v462 = vld [vmem:[#allocation26 + $0x2c] sm:$0xf]
    %v463 = vld [vmem:[#allocation26 + $0x30] sm:$0xf]
    %v464 = vld [vmem:[#allocation26 + $0x34] sm:$0xf]
    %v465 = vld [vmem:[#allocation26 + $0x38] sm:$0xf]
    %v466 = vld [vmem:[#allocation26 + $0x3c] sm:$0xf]
    %v467 = vld [vmem:[#allocation28] sm:$0xf]
    %v468 = vld [vmem:[#allocation28 + $0x4] sm:$0xf]
    %v469 = vld [vmem:[#allocation28 + $0x8] sm:$0xf]
    %v470 = vld [vmem:[#allocation28 + $0xc] sm:$0xf]
    %v471 = vld [vmem:[#allocation28 + $0x10] sm:$0xf]
    %v472 = vld [vmem:[#allocation28 + $0x14] sm:$0xf]
    %v473 = vld [vmem:[#allocation28 + $0x18] sm:$0xf]
    %v474 = vld [vmem:[#allocation28 + $0x1c] sm:$0xf]
    %v475 = vld [vmem:[#allocation28 + $0x20] sm:$0xf]
    %v476 = vld [vmem:[#allocation28 + $0x24] sm:$0xf]
    %v477 = vld [vmem:[#allocation28 + $0x28] sm:$0xf]
    %v478 = vld [vmem:[#allocation28 + $0x2c] sm:$0xf]
    %v479 = vld [vmem:[#allocation28 + $0x30] sm:$0xf]
    %v480 = vld [vmem:[#allocation28 + $0x34] sm:$0xf]
    %v481 = vld [vmem:[#allocation28 + $0x38] sm:$0xf]
    %v482 = vld [vmem:[#allocation28 + $0x3c] sm:$0xf]
    %v483 = vld [vmem:[%s21] sm:$0x1]
    %v484 = vld [vmem:[%s22] sm:$0x1]
    %v485 = vld [vmem:[#allocation29] sm:$0xf]
    %v486 = vld [vmem:[#allocation29 + $0x4] sm:$0xf]
    %v487 = vld [vmem:[#allocation29 + $0x8] sm:$0xf]
    %v488 = vld [vmem:[#allocation29 + $0xc] sm:$0xf]
    %v489 = vld [vmem:[#allocation29 + $0x10] sm:$0xf]
    %v490 = vld [vmem:[#allocation29 + $0x14] sm:$0xf]
    %v491 = vld [vmem:[#allocation29 + $0x18] sm:$0xf]
    %v492 = vld [vmem:[#allocation29 + $0x1c] sm:$0xf]
    %v493 = vld [vmem:[#allocation29 + $0x20] sm:$0xf]
    %v494 = vld [vmem:[#allocation29 + $0x24] sm:$0xf]
    %v495 = vld [vmem:[#allocation29 + $0x28] sm:$0xf]
    %v496 = vld [vmem:[#allocation29 + $0x2c] sm:$0xf]
    %v497 = vld [vmem:[#allocation29 + $0x30] sm:$0xf]
    %v498 = vld [vmem:[#allocation29 + $0x34] sm:$0xf]
    %v499 = vld [vmem:[#allocation29 + $0x38] sm:$0xf]
    %v500 = vld [vmem:[#allocation29 + $0x3c] sm:$0xf]
    %v501 = vld [vmem:[#allocation31] sm:$0xf]
    %v502 = vld [vmem:[#allocation31 + $0x4] sm:$0xf]
    %v503 = vld [vmem:[#allocation31 + $0x8] sm:$0xf]
    %v504 = vld [vmem:[#allocation31 + $0xc] sm:$0xf]
    %v505 = vld [vmem:[#allocation31 + $0x10] sm:$0xf]
    %v506 = vld [vmem:[#allocation31 + $0x14] sm:$0xf]
    %v507 = vld [vmem:[#allocation31 + $0x18] sm:$0xf]
    %v508 = vld [vmem:[#allocation31 + $0x1c] sm:$0xf]
    %v509 = vld [vmem:[#allocation31 + $0x20] sm:$0xf]
    %v510 = vld [vmem:[#allocation31 + $0x24] sm:$0xf]
    %v511 = vld [vmem:[#allocation31 + $0x28] sm:$0xf]
    %v512 = vld [vmem:[#allocation31 + $0x2c] sm:$0xf]
    %v513 = vld [vmem:[#allocation31 + $0x30] sm:$0xf]
    %v514 = vld [vmem:[#allocation31 + $0x34] sm:$0xf]
    %v515 = vld [vmem:[#allocation31 + $0x38] sm:$0xf]
    %v516 = vld [vmem:[#allocation31 + $0x3c] sm:$0xf]
    %v517 = vld [vmem:[%s25] sm:$0x1]
    %v518 = vld [vmem:[%s0] sm:$0xff]
    %v519 = vld [vmem:[#allocation2] sm:$0xff]
    %v520 = vld [vmem:[#allocation5] sm:$0xf]
    %v521 = vld [vmem:[#allocation7] sm:$0xf]
    %v522 = vld [vmem:[#allocation8] sm:$0xf]
    %v523 = vld [vmem:[#allocation10] sm:$0xf]
    %v524 = vld [vmem:[%s6] sm:$0xf]
    %v525 = vld [vmem:[%s6 + $0x4] sm:$0xf]
    %v526 = vld [vmem:[%s7] sm:$0xff]
    %v527 = vld [vmem:[#allocation11] sm:$0x3]
    %v528 = vld [vmem:[#allocation13] sm:$0x3]
    %v529 = vld [vmem:[#allocation14] sm:$0x3]
    %v530 = vunpack.c.l.bf16 %v522
    %vm531 = vcmp.gt.f32.partialorder %v530, 0.0
    %vm532 = vcmask 64512
    %v533 = vsel %vm532, %v530, 0.0
    %534 = vadd.xlane.f32.xlu0 %v533
    %v535 = vpop.xlane.xlu0 %534
    %vm536 = vcmp.gt.f32.partialorder %v535, 0.0
    %v537 = vsel %vm536, 1, 0
    %v538 = vcvt.s32.f32 %v537
    loop: start=0, step=1, limit=2
    $region182: #{tpu_custom_call.1} parent=1 // loop_pre_header
      _
    $region183: #{tpu_custom_call.1} parent=1 // loop_header
      %s540 = sphi 0, %s544
      %p541 = scmp.ge.s32.totalorder %s540, 2
      %v545 = vphi %v518, %v1520
      %v546 = vphi %v519, %v1598
    $region184: #{tpu_custom_call.1} parent=1 // loop_header_branch
      %543 = sbr.rel (%p541) target = $region188
    $region185: #{tpu_custom_call.1} parent=1 // loop_body
      %v547 = vpack.c.bf16 %v545, %v545
      %v549 = vlaneseq
      %v550 = vshrl.u32 %v549, 7
      %v551 = vsub.s32 0, %v550
      %v552 = vrot.slane %v336, %v551
      %v553 = vlaneseq
      %v554 = vshrl.u32 %v553, 7
      %v555 = vsub.s32 1, %v554
      %v556 = vrot.slane %v336, %v555
      %v575 = vunpack.c.l.b16 %v320
      %v576 = vunpack.c.h.b16 %v320
      %v577 = vunpack.c.l.b16 %v321
      %v578 = vunpack.c.h.b16 %v321
      %v579 = vunpack.c.l.b16 %v322
      %v580 = vunpack.c.h.b16 %v322
      %v581 = vunpack.c.l.b16 %v323
      %v582 = vunpack.c.h.b16 %v323
      %v583 = vunpack.c.l.b16 %v324
      %v584 = vunpack.c.h.b16 %v324
      %v585 = vunpack.c.l.b16 %v325
      %v586 = vunpack.c.h.b16 %v325
      %v587 = vunpack.c.l.b16 %v326
      %v588 = vunpack.c.h.b16 %v326
      %v589 = vunpack.c.l.b16 %v327
      %v590 = vunpack.c.h.b16 %v327
      %v591 = vunpack.c.l.b16 %v328
      %v592 = vunpack.c.h.b16 %v328
      %v593 = vunpack.c.l.b16 %v329
      %v594 = vunpack.c.h.b16 %v329
      %v595 = vunpack.c.l.b16 %v330
      %v596 = vunpack.c.h.b16 %v330
      %v597 = vunpack.c.l.b16 %v331
      %v598 = vunpack.c.h.b16 %v331
      %v599 = vunpack.c.l.b16 %v332
      %v600 = vunpack.c.h.b16 %v332
      %v601 = vunpack.c.l.b16 %v333
      %v602 = vunpack.c.h.b16 %v333
      %v603 = vunpack.c.l.b16 %v334
      %v604 = vunpack.c.h.b16 %v334
      %v605 = vunpack.c.l.b16 %v335
      %v606 = vunpack.c.h.b16 %v335
      %v607 = vpack.c.b16 %v577, %v575
      %v608 = vpack.c.b16 %v578, %v576
      %v609 = vpack.c.b16 %v581, %v579
      %v610 = vpack.c.b16 %v582, %v580
      %v611 = vpack.c.b16 %v585, %v583
      %v612 = vpack.c.b16 %v586, %v584
      %v613 = vpack.c.b16 %v589, %v587
      %v614 = vpack.c.b16 %v590, %v588
      %v615 = vpack.c.b16 %v593, %v591
      %v616 = vpack.c.b16 %v594, %v592
      %v617 = vpack.c.b16 %v597, %v595
      %v618 = vpack.c.b16 %v598, %v596
      %v619 = vpack.c.b16 %v601, %v599
      %v620 = vpack.c.b16 %v602, %v600
      %v621 = vpack.c.b16 %v605, %v603
      %v622 = vpack.c.b16 %v606, %v604
      %639 = vmatprep.subr.bf16.mxu0 %v608
      %640 = vmatpush1.bf16.msra.mxu0 %v607
      %641 = vmatprep.subr.bf16.mxu0 %v610
      %642 = vmatpush1.bf16.msra.mxu0 %v609
      %643 = vmatprep.subr.bf16.mxu0 %v612
      %644 = vmatpush1.bf16.msra.mxu0 %v611
      %645 = vmatprep.subr.bf16.mxu0 %v614
      %646 = vmatpush1.bf16.msra.mxu0 %v613
      %647 = vmatprep.subr.bf16.mxu0 %v616
      %648 = vmatpush1.bf16.msra.mxu0 %v615
      %649 = vmatprep.subr.bf16.mxu0 %v618
      %650 = vmatpush1.bf16.msra.mxu0 %v617
      %651 = vmatprep.subr.bf16.mxu0 %v620
      %652 = vmatpush1.bf16.msra.mxu0 %v619
      %653 = vmatprep.subr.bf16.mxu0 %v622
      %654 = vmatpush1.bf16.msra.mxu0 %v621
      %655 = vmatprep.subr.bf16.mxu0 0
      %656 = vmatpush1.bf16.msra.mxu0 0
      %657 = vmatprep.subr.bf16.mxu0 0
      %658 = vmatpush1.bf16.msra.mxu0 0
      %659 = vmatprep.subr.bf16.mxu0 0
      %660 = vmatpush1.bf16.msra.mxu0 0
      %661 = vmatprep.subr.bf16.mxu0 0
      %662 = vmatpush1.bf16.msra.mxu0 0
      %663 = vmatprep.subr.bf16.mxu0 0
      %664 = vmatpush1.bf16.msra.mxu0 0
      %665 = vmatprep.subr.bf16.mxu0 0
      %666 = vmatpush1.bf16.msra.mxu0 0
      %667 = vmatprep.subr.bf16.mxu0 0
      %668 = vmatpush1.bf16.msra.mxu0 0
      %669 = vmatprep.subr.bf16.mxu0 0
      %670 = vmatpush1.bf16.msra.mxu0 0
      %671 = vmatprep.mubr.bf16.mxu0 0
      %672 = vmatmul.mubr.bf16.gmra.mrb[0].mxu0 %v547
      %v673 = vpop.f32.mrb[0].mxu0
      %v674 = vadd.f32 %v552, %v673
      %v675 = vpop.f32.mrb[0].mxu0
      %v676 = vadd.f32 %v556, %v675
      %v677 = vpop.f32.mrb[0].mxu0
      %v678 = vpop.f32.mrb[0].mxu0
      %679 = vdwg.mxu0
      %v680 = vpack.c.bf16 %v674, %v674
      %v682 = vsel %vm532, %v520, 0
      %vm684 = vcmask 1043456
      %v686 = vsel %vm684, %v680, 0
      %688 = vmatprep.subr.bf16.mxu0 0
      %689 = vmatpush1.bf16.msra.mxu0 %v686
      %690 = vmatprep.subr.bf16.mxu0 0
      %691 = vmatpush1.bf16.msra.mxu0 0
      %692 = vmatprep.subr.bf16.mxu0 0
      %693 = vmatpush1.bf16.msra.mxu0 0
      %694 = vmatprep.subr.bf16.mxu0 0
      %695 = vmatpush1.bf16.msra.mxu0 0
      %696 = vmatprep.subr.bf16.mxu0 0
      %697 = vmatpush1.bf16.msra.mxu0 0
      %698 = vmatprep.subr.bf16.mxu0 0
      %699 = vmatpush1.bf16.msra.mxu0 0
      %700 = vmatprep.subr.bf16.mxu0 0
      %701 = vmatpush1.bf16.msra.mxu0 0
      %702 = vmatprep.subr.bf16.mxu0 0
      %703 = vmatpush1.bf16.msra.mxu0 0
      %704 = vmatprep.subr.bf16.mxu0 0
      %705 = vmatpush1.bf16.msra.mxu0 0
      %706 = vmatprep.subr.bf16.mxu0 0
      %707 = vmatpush1.bf16.msra.mxu0 0
      %708 = vmatprep.subr.bf16.mxu0 0
      %709 = vmatpush1.bf16.msra.mxu0 0
      %710 = vmatprep.subr.bf16.mxu0 0
      %711 = vmatpush1.bf16.msra.mxu0 0
      %712 = vmatprep.subr.bf16.mxu0 0
      %713 = vmatpush1.bf16.msra.mxu0 0
      %714 = vmatprep.subr.bf16.mxu0 0
      %715 = vmatpush1.bf16.msra.mxu0 0
      %716 = vmatprep.subr.bf16.mxu0 0
      %717 = vmatpush1.bf16.msra.mxu0 0
      %718 = vmatprep.subr.bf16.mxu0 0
      %719 = vmatpush1.bf16.msra.mxu0 0
      %720 = vmatprep.mubr.bf16.mxu0 0
      %721 = vmatmul.mubr.bf16.gmra.mrb[0].mxu0 %v682
      %v722 = vpop.f32.mrb[0].mxu0
      %v723 = vadd.f32 0.0, %v722
      %v724 = vpop.f32.mrb[0].mxu0
      %v725 = vpop.f32.mrb[0].mxu0
      %v726 = vpop.f32.mrb[0].mxu0
      %727 = vdwg.mxu0
      %v728 = vpack.c.bf16 %v723, %v723
      %v729 = vpack.c.bf16 %v676, %v676
      %v731 = vsel %vm532, %v521, 0
      %v734 = vsel %vm684, %v729, 0
      %736 = vmatprep.subr.bf16.mxu0 0
      %737 = vmatpush1.bf16.msra.mxu0 %v734
      %738 = vmatprep.subr.bf16.mxu0 0
      %739 = vmatpush1.bf16.msra.mxu0 0
      %740 = vmatprep.subr.bf16.mxu0 0
      %741 = vmatpush1.bf16.msra.mxu0 0
      %742 = vmatprep.subr.bf16.mxu0 0
      %743 = vmatpush1.bf16.msra.mxu0 0
      %744 = vmatprep.subr.bf16.mxu0 0
      %745 = vmatpush1.bf16.msra.mxu0 0
      %746 = vmatprep.subr.bf16.mxu0 0
      %747 = vmatpush1.bf16.msra.mxu0 0
      %748 = vmatprep.subr.bf16.mxu0 0
      %749 = vmatpush1.bf16.msra.mxu0 0
      %750 = vmatprep.subr.bf16.mxu0 0
      %751 = vmatpush1.bf16.msra.mxu0 0
      %752 = vmatprep.subr.bf16.mxu0 0
      %753 = vmatpush1.bf16.msra.mxu0 0
      %754 = vmatprep.subr.bf16.mxu0 0
      %755 = vmatpush1.bf16.msra.mxu0 0
      %756 = vmatprep.subr.bf16.mxu0 0
      %757 = vmatpush1.bf16.msra.mxu0 0
      %758 = vmatprep.subr.bf16.mxu0 0
      %759 = vmatpush1.bf16.msra.mxu0 0
      %760 = vmatprep.subr.bf16.mxu0 0
      %761 = vmatpush1.bf16.msra.mxu0 0
      %762 = vmatprep.subr.bf16.mxu0 0
      %763 = vmatpush1.bf16.msra.mxu0 0
      %764 = vmatprep.subr.bf16.mxu0 0
      %765 = vmatpush1.bf16.msra.mxu0 0
      %766 = vmatprep.subr.bf16.mxu0 0
      %767 = vmatpush1.bf16.msra.mxu0 0
      %768 = vmatprep.mubr.bf16.mxu0 0
      %769 = vmatmul.mubr.bf16.gmra.mrb[0].mxu0 %v731
      %v770 = vpop.f32.mrb[0].mxu0
      %v771 = vadd.f32 0.0, %v770
      %v772 = vpop.f32.mrb[0].mxu0
      %v773 = vpop.f32.mrb[0].mxu0
      %v774 = vpop.f32.mrb[0].mxu0
      %775 = vdwg.mxu0
      %v776 = vpack.c.bf16 %v771, %v771
      %v809 = vunpack.c.l.b16 %v369
      %v810 = vunpack.c.h.b16 %v369
      %v811 = vunpack.c.l.b16 %v370
      %v812 = vunpack.c.l.b16 %v371
      %v813 = vunpack.c.h.b16 %v371
      %v814 = vunpack.c.l.b16 %v372
      %v815 = vunpack.c.l.b16 %v373
      %v816 = vunpack.c.h.b16 %v373
      %v817 = vunpack.c.l.b16 %v374
      %v818 = vunpack.c.l.b16 %v375
      %v819 = vunpack.c.h.b16 %v375
      %v820 = vunpack.c.l.b16 %v376
      %v821 = vunpack.c.l.b16 %v377
      %v822 = vunpack.c.h.b16 %v377
      %v823 = vunpack.c.l.b16 %v378
      %v824 = vunpack.c.l.b16 %v379
      %v825 = vunpack.c.h.b16 %v379
      %v826 = vunpack.c.l.b16 %v380
      %v827 = vunpack.c.l.b16 %v381
      %v828 = vunpack.c.h.b16 %v381
      %v829 = vunpack.c.l.b16 %v382
      %v830 = vunpack.c.l.b16 %v383
      %v831 = vunpack.c.h.b16 %v383
      %v832 = vunpack.c.l.b16 %v384
      %v833 = vunpack.c.l.b16 %v385
      %v834 = vunpack.c.h.b16 %v385
      %v835 = vunpack.c.l.b16 %v386
      %v836 = vunpack.c.l.b16 %v387
      %v837 = vunpack.c.h.b16 %v387
      %v838 = vunpack.c.l.b16 %v388
      %v839 = vunpack.c.l.b16 %v389
      %v840 = vunpack.c.h.b16 %v389
      %v841 = vunpack.c.l.b16 %v390
      %v842 = vunpack.c.l.b16 %v391
      %v843 = vunpack.c.h.b16 %v391
      %v844 = vunpack.c.l.b16 %v392
      %v845 = vunpack.c.l.b16 %v393
      %v846 = vunpack.c.h.b16 %v393
      %v847 = vunpack.c.l.b16 %v394
      %v848 = vunpack.c.l.b16 %v395
      %v849 = vunpack.c.h.b16 %v395
      %v850 = vunpack.c.l.b16 %v396
      %v851 = vunpack.c.l.b16 %v397
      %v852 = vunpack.c.h.b16 %v397
      %v853 = vunpack.c.l.b16 %v398
      %v854 = vunpack.c.l.b16 %v399
      %v855 = vunpack.c.h.b16 %v399
      %v856 = vunpack.c.l.b16 %v400
      %v857 = vpack.c.b16 %v812, %v809
      %v858 = vpack.c.b16 %v813, %v810
      %v859 = vpack.c.b16 %v814, %v811
      %v860 = vpack.c.b16 %v818, %v815
      %v861 = vpack.c.b16 %v819, %v816
      %v862 = vpack.c.b16 %v820, %v817
      %v863 = vpack.c.b16 %v824, %v821
      %v864 = vpack.c.b16 %v825, %v822
      %v865 = vpack.c.b16 %v826, %v823
      %v866 = vpack.c.b16 %v830, %v827
      %v867 = vpack.c.b16 %v831, %v828
      %v868 = vpack.c.b16 %v832, %v829
      %v869 = vpack.c.b16 %v836, %v833
      %v870 = vpack.c.b16 %v837, %v834
      %v871 = vpack.c.b16 %v838, %v835
      %v872 = vpack.c.b16 %v842, %v839
      %v873 = vpack.c.b16 %v843, %v840
      %v874 = vpack.c.b16 %v844, %v841
      %v875 = vpack.c.b16 %v848, %v845
      %v876 = vpack.c.b16 %v849, %v846
      %v877 = vpack.c.b16 %v850, %v847
      %v878 = vpack.c.b16 %v854, %v851
      %v879 = vpack.c.b16 %v855, %v852
      %v880 = vpack.c.b16 %v856, %v853
      %905 = vmatprep.subr.bf16.mxu0 %v858
      %906 = vmatpush1.bf16.msra.mxu0 %v857
      %907 = vmatprep.subr.bf16.mxu0 %v861
      %908 = vmatpush1.bf16.msra.mxu0 %v860
      %909 = vmatprep.subr.bf16.mxu0 %v864
      %910 = vmatpush1.bf16.msra.mxu0 %v863
      %911 = vmatprep.subr.bf16.mxu0 %v867
      %912 = vmatpush1.bf16.msra.mxu0 %v866
      %913 = vmatprep.subr.bf16.mxu0 %v870
      %914 = vmatpush1.bf16.msra.mxu0 %v869
      %915 = vmatprep.subr.bf16.mxu0 %v873
      %916 = vmatpush1.bf16.msra.mxu0 %v872
      %917 = vmatprep.subr.bf16.mxu0 %v876
      %918 = vmatpush1.bf16.msra.mxu0 %v875
      %919 = vmatprep.subr.bf16.mxu0 %v879
      %920 = vmatpush1.bf16.msra.mxu0 %v878
      %921 = vmatprep.subr.bf16.mxu0 0
      %922 = vmatpush1.bf16.msra.mxu0 0
      %923 = vmatprep.subr.bf16.mxu0 0
      %924 = vmatpush1.bf16.msra.mxu0 0
      %925 = vmatprep.subr.bf16.mxu0 0
      %926 = vmatpush1.bf16.msra.mxu0 0
      %927 = vmatprep.subr.bf16.mxu0 0
      %928 = vmatpush1.bf16.msra.mxu0 0
      %929 = vmatprep.subr.bf16.mxu0 0
      %930 = vmatpush1.bf16.msra.mxu0 0
      %931 = vmatprep.subr.bf16.mxu0 0
      %932 = vmatpush1.bf16.msra.mxu0 0
      %933 = vmatprep.subr.bf16.mxu0 0
      %934 = vmatpush1.bf16.msra.mxu0 0
      %935 = vmatprep.subr.bf16.mxu0 0
      %936 = vmatpush1.bf16.msra.mxu0 0
      %937 = vmatprep.mubr.bf16.mxu0 0
      %938 = vmatmul.mubr.bf16.gmra.mrb[0].mxu0 %v776
      %v939 = vpop.f32.mrb[0].mxu0
      %v940 = vadd.f32 0.0, %v939
      %v941 = vpop.f32.mrb[0].mxu0
      %v942 = vadd.f32 0.0, %v941
      %v943 = vpop.f32.mrb[0].mxu0
      %v944 = vpop.f32.mrb[0].mxu0
      %945 = vdwg.mxu0
      %946 = vmatprep.subr.bf16.mxu0 0
      %947 = vmatpush1.bf16.msra.mxu0 %v859
      %948 = vmatprep.subr.bf16.mxu0 0
      %949 = vmatpush1.bf16.msra.mxu0 %v862
      %950 = vmatprep.subr.bf16.mxu0 0
      %951 = vmatpush1.bf16.msra.mxu0 %v865
      %952 = vmatprep.subr.bf16.mxu0 0
      %953 = vmatpush1.bf16.msra.mxu0 %v868
      %954 = vmatprep.subr.bf16.mxu0 0
      %955 = vmatpush1.bf16.msra.mxu0 %v871
      %956 = vmatprep.subr.bf16.mxu0 0
      %957 = vmatpush1.bf16.msra.mxu0 %v874
      %958 = vmatprep.subr.bf16.mxu0 0
      %959 = vmatpush1.bf16.msra.mxu0 %v877
      %960 = vmatprep.subr.bf16.mxu0 0
      %961 = vmatpush1.bf16.msra.mxu0 %v880
      %962 = vmatprep.subr.bf16.mxu0 0
      %963 = vmatpush1.bf16.msra.mxu0 0
      %964 = vmatprep.subr.bf16.mxu0 0
      %965 = vmatpush1.bf16.msra.mxu0 0
      %966 = vmatprep.subr.bf16.mxu0 0
      %967 = vmatpush1.bf16.msra.mxu0 0
      %968 = vmatprep.subr.bf16.mxu0 0
      %969 = vmatpush1.bf16.msra.mxu0 0
      %970 = vmatprep.subr.bf16.mxu0 0
      %971 = vmatpush1.bf16.msra.mxu0 0
      %972 = vmatprep.subr.bf16.mxu0 0
      %973 = vmatpush1.bf16.msra.mxu0 0
      %974 = vmatprep.subr.bf16.mxu0 0
      %975 = vmatpush1.bf16.msra.mxu0 0
      %976 = vmatprep.subr.bf16.mxu0 0
      %977 = vmatpush1.bf16.msra.mxu0 0
      %978 = vmatprep.mubr.bf16.mxu0 0
      %979 = vmatmul.mubr.bf16.gmra.mrb[0].mxu0 %v776
      %v980 = vpop.f32.mrb[0].mxu0
      %v981 = vadd.f32 0.0, %v980
      %v982 = vpop.f32.mrb[0].mxu0
      %v983 = vpop.f32.mrb[0].mxu0
      %v984 = vpop.f32.mrb[0].mxu0
      %985 = vdwg.mxu0
      %v1018 = vunpack.c.l.b16 %v337
      %v1019 = vunpack.c.h.b16 %v337
      %v1020 = vunpack.c.l.b16 %v338
      %v1021 = vunpack.c.l.b16 %v339
      %v1022 = vunpack.c.h.b16 %v339
      %v1023 = vunpack.c.l.b16 %v340
      %v1024 = vunpack.c.l.b16 %v341
      %v1025 = vunpack.c.h.b16 %v341
      %v1026 = vunpack.c.l.b16 %v342
      %v1027 = vunpack.c.l.b16 %v343
      %v1028 = vunpack.c.h.b16 %v343
      %v1029 = vunpack.c.l.b16 %v344
      %v1030 = vunpack.c.l.b16 %v345
      %v1031 = vunpack.c.h.b16 %v345
      %v1032 = vunpack.c.l.b16 %v346
      %v1033 = vunpack.c.l.b16 %v347
      %v1034 = vunpack.c.h.b16 %v347
      %v1035 = vunpack.c.l.b16 %v348
      %v1036 = vunpack.c.l.b16 %v349
      %v1037 = vunpack.c.h.b16 %v349
      %v1038 = vunpack.c.l.b16 %v350
      %v1039 = vunpack.c.l.b16 %v351
      %v1040 = vunpack.c.h.b16 %v351
      %v1041 = vunpack.c.l.b16 %v352
      %v1042 = vunpack.c.l.b16 %v353
      %v1043 = vunpack.c.h.b16 %v353
      %v1044 = vunpack.c.l.b16 %v354
      %v1045 = vunpack.c.l.b16 %v355
      %v1046 = vunpack.c.h.b16 %v355
      %v1047 = vunpack.c.l.b16 %v356
      %v1048 = vunpack.c.l.b16 %v357
      %v1049 = vunpack.c.h.b16 %v357
      %v1050 = vunpack.c.l.b16 %v358
      %v1051 = vunpack.c.l.b16 %v359
      %v1052 = vunpack.c.h.b16 %v359
      %v1053 = vunpack.c.l.b16 %v360
      %v1054 = vunpack.c.l.b16 %v361
      %v1055 = vunpack.c.h.b16 %v361
      %v1056 = vunpack.c.l.b16 %v362
      %v1057 = vunpack.c.l.b16 %v363
      %v1058 = vunpack.c.h.b16 %v363
      %v1059 = vunpack.c.l.b16 %v364
      %v1060 = vunpack.c.l.b16 %v365
      %v1061 = vunpack.c.h.b16 %v365
      %v1062 = vunpack.c.l.b16 %v366
      %v1063 = vunpack.c.l.b16 %v367
      %v1064 = vunpack.c.h.b16 %v367
      %v1065 = vunpack.c.l.b16 %v368
      %v1066 = vpack.c.b16 %v1021, %v1018
      %v1067 = vpack.c.b16 %v1022, %v1019
      %v1068 = vpack.c.b16 %v1023, %v1020
      %v1069 = vpack.c.b16 %v1027, %v1024
      %v1070 = vpack.c.b16 %v1028, %v1025
      %v1071 = vpack.c.b16 %v1029, %v1026
      %v1072 = vpack.c.b16 %v1033, %v1030
      %v1073 = vpack.c.b16 %v1034, %v1031
      %v1074 = vpack.c.b16 %v1035, %v1032
      %v1075 = vpack.c.b16 %v1039, %v1036
      %v1076 = vpack.c.b16 %v1040, %v1037
      %v1077 = vpack.c.b16 %v1041, %v1038
      %v1078 = vpack.c.b16 %v1045, %v1042
      %v1079 = vpack.c.b16 %v1046, %v1043
      %v1080 = vpack.c.b16 %v1047, %v1044
      %v1081 = vpack.c.b16 %v1051, %v1048
      %v1082 = vpack.c.b16 %v1052, %v1049
      %v1083 = vpack.c.b16 %v1053, %v1050
      %v1084 = vpack.c.b16 %v1057, %v1054
      %v1085 = vpack.c.b16 %v1058, %v1055
      %v1086 = vpack.c.b16 %v1059, %v1056
      %v1087 = vpack.c.b16 %v1063, %v1060
      %v1088 = vpack.c.b16 %v1064, %v1061
      %v1089 = vpack.c.b16 %v1065, %v1062
      %1114 = vmatprep.subr.bf16.mxu0 %v1067
      %1115 = vmatpush1.bf16.msra.mxu0 %v1066
      %1116 = vmatprep.subr.bf16.mxu0 %v1070
      %1117 = vmatpush1.bf16.msra.mxu0 %v1069
      %1118 = vmatprep.subr.bf16.mxu0 %v1073
      %1119 = vmatpush1.bf16.msra.mxu0 %v1072
      %1120 = vmatprep.subr.bf16.mxu0 %v1076
      %1121 = vmatpush1.bf16.msra.mxu0 %v1075
      %1122 = vmatprep.subr.bf16.mxu0 %v1079
      %1123 = vmatpush1.bf16.msra.mxu0 %v1078
      %1124 = vmatprep.subr.bf16.mxu0 %v1082
      %1125 = vmatpush1.bf16.msra.mxu0 %v1081
      %1126 = vmatprep.subr.bf16.mxu0 %v1085
      %1127 = vmatpush1.bf16.msra.mxu0 %v1084
      %1128 = vmatprep.subr.bf16.mxu0 %v1088
      %1129 = vmatpush1.bf16.msra.mxu0 %v1087
      %1130 = vmatprep.subr.bf16.mxu0 0
      %1131 = vmatpush1.bf16.msra.mxu0 0
      %1132 = vmatprep.subr.bf16.mxu0 0
      %1133 = vmatpush1.bf16.msra.mxu0 0
      %1134 = vmatprep.subr.bf16.mxu0 0
      %1135 = vmatpush1.bf16.msra.mxu0 0
      %1136 = vmatprep.subr.bf16.mxu0 0
      %1137 = vmatpush1.bf16.msra.mxu0 0
      %1138 = vmatprep.subr.bf16.mxu0 0
      %1139 = vmatpush1.bf16.msra.mxu0 0
      %1140 = vmatprep.subr.bf16.mxu0 0
      %1141 = vmatpush1.bf16.msra.mxu0 0
      %1142 = vmatprep.subr.bf16.mxu0 0
      %1143 = vmatpush1.bf16.msra.mxu0 0
      %1144 = vmatprep.subr.bf16.mxu0 0
      %1145 = vmatpush1.bf16.msra.mxu0 0
      %1146 = vmatprep.mubr.bf16.mxu0 0
      %1147 = vmatmul.mubr.bf16.gmra.mrb[0].mxu0 %v728
      %v1148 = vpop.f32.mrb[0].mxu0
      %v1149 = vadd.f32 %v940, %v1148
      %v1150 = vpop.f32.mrb[0].mxu0
      %v1151 = vadd.f32 %v942, %v1150
      %v1152 = vpop.f32.mrb[0].mxu0
      %v1153 = vpop.f32.mrb[0].mxu0
      %1154 = vdwg.mxu0
      %1155 = vmatprep.subr.bf16.mxu0 0
      %1156 = vmatpush1.bf16.msra.mxu0 %v1068
      %1157 = vmatprep.subr.bf16.mxu0 0
      %1158 = vmatpush1.bf16.msra.mxu0 %v1071
      %1159 = vmatprep.subr.bf16.mxu0 0
      %1160 = vmatpush1.bf16.msra.mxu0 %v1074
      %1161 = vmatprep.subr.bf16.mxu0 0
      %1162 = vmatpush1.bf16.msra.mxu0 %v1077
      %1163 = vmatprep.subr.bf16.mxu0 0
      %1164 = vmatpush1.bf16.msra.mxu0 %v1080
      %1165 = vmatprep.subr.bf16.mxu0 0
      %1166 = vmatpush1.bf16.msra.mxu0 %v1083
      %1167 = vmatprep.subr.bf16.mxu0 0
      %1168 = vmatpush1.bf16.msra.mxu0 %v1086
      %1169 = vmatprep.subr.bf16.mxu0 0
      %1170 = vmatpush1.bf16.msra.mxu0 %v1089
      %1171 = vmatprep.subr.bf16.mxu0 0
      %1172 = vmatpush1.bf16.msra.mxu0 0
      %1173 = vmatprep.subr.bf16.mxu0 0
      %1174 = vmatpush1.bf16.msra.mxu0 0
      %1175 = vmatprep.subr.bf16.mxu0 0
      %1176 = vmatpush1.bf16.msra.mxu0 0
      %1177 = vmatprep.subr.bf16.mxu0 0
      %1178 = vmatpush1.bf16.msra.mxu0 0
      %1179 = vmatprep.subr.bf16.mxu0 0
      %1180 = vmatpush1.bf16.msra.mxu0 0
      %1181 = vmatprep.subr.bf16.mxu0 0
      %1182 = vmatpush1.bf16.msra.mxu0 0
      %1183 = vmatprep.subr.bf16.mxu0 0
      %1184 = vmatpush1.bf16.msra.mxu0 0
      %1185 = vmatprep.subr.bf16.mxu0 0
      %1186 = vmatpush1.bf16.msra.mxu0 0
      %1187 = vmatprep.mubr.bf16.mxu0 0
      %1188 = vmatmul.mubr.bf16.gmra.mrb[0].mxu0 %v728
      %v1189 = vpop.f32.mrb[0].mxu0
      %v1190 = vadd.f32 %v981, %v1189
      %v1191 = vpop.f32.mrb[0].mxu0
      %v1192 = vpop.f32.mrb[0].mxu0
      %v1193 = vpop.f32.mrb[0].mxu0
      %1194 = vdwg.mxu0
      %v1196 = vlaneseq
      %v1197 = vshrl.u32 %v1196, 7
      %v1198 = vsub.s32 0, %v1197
      %v1199 = vrot.slane %v401, %v1198
      %v1200 = vlaneseq
      %v1201 = vshrl.u32 %v1200, 7
      %v1202 = vsub.s32 1, %v1201
      %v1203 = vrot.slane %v401, %v1202
      %v1204 = vlaneseq
      %v1205 = vshrl.u32 %v1204, 7
      %v1206 = vsub.s32 2, %v1205
      %v1207 = vrot.slane %v401, %v1206
      %v1211 = vadd.f32 %v1149, %v1199
      %v1212 = vadd.f32 %v1151, %v1203
      %v1213 = vadd.f32 %v1190, %v1207
      %v1215 = vlaneseq
      %v1216 = vshrl.u32 %v1215, 7
      %v1217 = vsub.s32 0, %v1216
      %v1218 = vrot.slane %v434, %v1217
      %v1219 = vlaneseq
      %v1220 = vshrl.u32 %v1219, 7
      %v1221 = vsub.s32 1, %v1220
      %v1222 = vrot.slane %v434, %v1221
      %v1223 = vlaneseq
      %v1224 = vshrl.u32 %v1223, 7
      %v1225 = vsub.s32 2, %v1224
      %v1226 = vrot.slane %v434, %v1225
      %v1262 = vunpack.c.l.b16 %v402
      %v1263 = vunpack.c.h.b16 %v402
      %v1264 = vunpack.c.l.b16 %v403
      %v1265 = vunpack.c.l.b16 %v404
      %v1266 = vunpack.c.h.b16 %v404
      %v1267 = vunpack.c.l.b16 %v405
      %v1268 = vunpack.c.l.b16 %v406
      %v1269 = vunpack.c.h.b16 %v406
      %v1270 = vunpack.c.l.b16 %v407
      %v1271 = vunpack.c.l.b16 %v408
      %v1272 = vunpack.c.h.b16 %v408
      %v1273 = vunpack.c.l.b16 %v409
      %v1274 = vunpack.c.l.b16 %v410
      %v1275 = vunpack.c.h.b16 %v410
      %v1276 = vunpack.c.l.b16 %v411
      %v1277 = vunpack.c.l.b16 %v412
      %v1278 = vunpack.c.h.b16 %v412
      %v1279 = vunpack.c.l.b16 %v413
      %v1280 = vunpack.c.l.b16 %v414
      %v1281 = vunpack.c.h.b16 %v414
      %v1282 = vunpack.c.l.b16 %v415
      %v1283 = vunpack.c.l.b16 %v416
      %v1284 = vunpack.c.h.b16 %v416
      %v1285 = vunpack.c.l.b16 %v417
      %v1286 = vunpack.c.l.b16 %v418
      %v1287 = vunpack.c.h.b16 %v418
      %v1288 = vunpack.c.l.b16 %v419
      %v1289 = vunpack.c.l.b16 %v420
      %v1290 = vunpack.c.h.b16 %v420
      %v1291 = vunpack.c.l.b16 %v421
      %v1292 = vunpack.c.l.b16 %v422
      %v1293 = vunpack.c.h.b16 %v422
      %v1294 = vunpack.c.l.b16 %v423
      %v1295 = vunpack.c.l.b16 %v424
      %v1296 = vunpack.c.h.b16 %v424
      %v1297 = vunpack.c.l.b16 %v425
      %v1298 = vunpack.c.l.b16 %v426
      %v1299 = vunpack.c.h.b16 %v426
      %v1300 = vunpack.c.l.b16 %v427
      %v1301 = vunpack.c.l.b16 %v428
      %v1302 = vunpack.c.h.b16 %v428
      %v1303 = vunpack.c.l.b16 %v429
      %v1304 = vunpack.c.l.b16 %v430
      %v1305 = vunpack.c.h.b16 %v430
      %v1306 = vunpack.c.l.b16 %v431
      %v1307 = vunpack.c.l.b16 %v432
      %v1308 = vunpack.c.h.b16 %v432
      %v1309 = vunpack.c.l.b16 %v433
      %v1310 = vpack.c.b16 %v1265, %v1262
      %v1311 = vpack.c.b16 %v1266, %v1263
      %v1312 = vpack.c.b16 %v1267, %v1264
      %v1313 = vpack.c.b16 %v1271, %v1268
      %v1314 = vpack.c.b16 %v1272, %v1269
      %v1315 = vpack.c.b16 %v1273, %v1270
      %v1316 = vpack.c.b16 %v1277, %v1274
      %v1317 = vpack.c.b16 %v1278, %v1275
      %v1318 = vpack.c.b16 %v1279, %v1276
      %v1319 = vpack.c.b16 %v1283, %v1280
      %v1320 = vpack.c.b16 %v1284, %v1281
      %v1321 = vpack.c.b16 %v1285, %v1282
      %v1322 = vpack.c.b16 %v1289, %v1286
      %v1323 = vpack.c.b16 %v1290, %v1287
      %v1324 = vpack.c.b16 %v1291, %v1288
      %v1325 = vpack.c.b16 %v1295, %v1292
      %v1326 = vpack.c.b16 %v1296, %v1293
      %v1327 = vpack.c.b16 %v1297, %v1294
      %v1328 = vpack.c.b16 %v1301, %v1298
      %v1329 = vpack.c.b16 %v1302, %v1299
      %v1330 = vpack.c.b16 %v1303, %v1300
      %v1331 = vpack.c.b16 %v1307, %v1304
      %v1332 = vpack.c.b16 %v1308, %v1305
      %v1333 = vpack.c.b16 %v1309, %v1306
      %1358 = vmatprep.subr.bf16.mxu0 %v1311
      %1359 = vmatpush1.bf16.msra.mxu0 %v1310
      %1360 = vmatprep.subr.bf16.mxu0 %v1314
      %1361 = vmatpush1.bf16.msra.mxu0 %v1313
      %1362 = vmatprep.subr.bf16.mxu0 %v1317
      %1363 = vmatpush1.bf16.msra.mxu0 %v1316
      %1364 = vmatprep.subr.bf16.mxu0 %v1320
      %1365 = vmatpush1.bf16.msra.mxu0 %v1319
      %1366 = vmatprep.subr.bf16.mxu0 %v1323
      %1367 = vmatpush1.bf16.msra.mxu0 %v1322
      %1368 = vmatprep.subr.bf16.mxu0 %v1326
      %1369 = vmatpush1.bf16.msra.mxu0 %v1325
      %1370 = vmatprep.subr.bf16.mxu0 %v1329
      %1371 = vmatpush1.bf16.msra.mxu0 %v1328
      %1372 = vmatprep.subr.bf16.mxu0 %v1332
      %1373 = vmatpush1.bf16.msra.mxu0 %v1331
      %1374 = vmatprep.subr.bf16.mxu0 0
      %1375 = vmatpush1.bf16.msra.mxu0 0
      %1376 = vmatprep.subr.bf16.mxu0 0
      %1377 = vmatpush1.bf16.msra.mxu0 0
      %1378 = vmatprep.subr.bf16.mxu0 0
      %1379 = vmatpush1.bf16.msra.mxu0 0
      %1380 = vmatprep.subr.bf16.mxu0 0
      %1381 = vmatpush1.bf16.msra.mxu0 0
      %1382 = vmatprep.subr.bf16.mxu0 0
      %1383 = vmatpush1.bf16.msra.mxu0 0
      %1384 = vmatprep.subr.bf16.mxu0 0
      %1385 = vmatpush1.bf16.msra.mxu0 0
      %1386 = vmatprep.subr.bf16.mxu0 0
      %1387 = vmatpush1.bf16.msra.mxu0 0
      %1388 = vmatprep.subr.bf16.mxu0 0
      %1389 = vmatpush1.bf16.msra.mxu0 0
      %1390 = vmatprep.mubr.bf16.mxu0 0
      %1391 = vmatmul.mubr.bf16.gmra.mrb[0].mxu0 %v547
      %v1392 = vpop.f32.mrb[0].mxu0
      %v1393 = vadd.f32 %v1218, %v1392
      %v1394 = vpop.f32.mrb[0].mxu0
      %v1395 = vadd.f32 %v1222, %v1394
      %v1396 = vpop.f32.mrb[0].mxu0
      %v1397 = vpop.f32.mrb[0].mxu0
      %1398 = vdwg.mxu0
      %1399 = vmatprep.subr.bf16.mxu0 0
      %1400 = vmatpush1.bf16.msra.mxu0 %v1312
      %1401 = vmatprep.subr.bf16.mxu0 0
      %1402 = vmatpush1.bf16.msra.mxu0 %v1315
      %1403 = vmatprep.subr.bf16.mxu0 0
      %1404 = vmatpush1.bf16.msra.mxu0 %v1318
      %1405 = vmatprep.subr.bf16.mxu0 0
      %1406 = vmatpush1.bf16.msra.mxu0 %v1321
      %1407 = vmatprep.subr.bf16.mxu0 0
      %1408 = vmatpush1.bf16.msra.mxu0 %v1324
      %1409 = vmatprep.subr.bf16.mxu0 0
      %1410 = vmatpush1.bf16.msra.mxu0 %v1327
      %1411 = vmatprep.subr.bf16.mxu0 0
      %1412 = vmatpush1.bf16.msra.mxu0 %v1330
      %1413 = vmatprep.subr.bf16.mxu0 0
      %1414 = vmatpush1.bf16.msra.mxu0 %v1333
      %1415 = vmatprep.subr.bf16.mxu0 0
      %1416 = vmatpush1.bf16.msra.mxu0 0
      %1417 = vmatprep.subr.bf16.mxu0 0
      %1418 = vmatpush1.bf16.msra.mxu0 0
      %1419 = vmatprep.subr.bf16.mxu0 0
      %1420 = vmatpush1.bf16.msra.mxu0 0
      %1421 = vmatprep.subr.bf16.mxu0 0
      %1422 = vmatpush1.bf16.msra.mxu0 0
      %1423 = vmatprep.subr.bf16.mxu0 0
      %1424 = vmatpush1.bf16.msra.mxu0 0
      %1425 = vmatprep.subr.bf16.mxu0 0
      %1426 = vmatpush1.bf16.msra.mxu0 0
      %1427 = vmatprep.subr.bf16.mxu0 0
      %1428 = vmatpush1.bf16.msra.mxu0 0
      %1429 = vmatprep.subr.bf16.mxu0 0
      %1430 = vmatpush1.bf16.msra.mxu0 0
      %1431 = vmatprep.mubr.bf16.mxu0 0
      %1432 = vmatmul.mubr.bf16.gmra.mrb[0].mxu0 %v547
      %v1433 = vpop.f32.mrb[0].mxu0
      %v1434 = vadd.f32 %v1226, %v1433
      %v1435 = vpop.f32.mrb[0].mxu0
      %v1436 = vpop.f32.mrb[0].mxu0
      %v1437 = vpop.f32.mrb[0].mxu0
      %1438 = vdwg.mxu0
      %v1439 = vadd.f32 %v1211, %v1393
      %v1440 = vxor.u32 %v1439, 2147483648
      %v1441 = vmul.f32 %v1440, 1.442695
      %v1442 = vpow.pop %v1441
      %v1443 = vadd.f32 %v1442, 1.0
      %v1444 = vrcp.pop %v1443
      %v1445 = vmul.f32 1.0, %v1444
      %v1446 = vadd.f32 %v1212, %v1395
      %v1447 = vxor.u32 %v1446, 2147483648
      %v1448 = vmul.f32 %v1447, 1.442695
      %v1449 = vpow.pop %v1448
      %v1450 = vadd.f32 %v1449, 1.0
      %v1451 = vrcp.pop %v1450
      %v1452 = vmul.f32 1.0, %v1451
      %v1453 = vmul.f32 %v1445, %v1434
      %v1454 = vadd.f32 %v1213, %v1453
      %v1455 = vtanh.pop %v1454
      %v1456 = vsub.f32 1.0, %v1452
      %v1457 = vmul.f32 %v1456, %v545
      %v1458 = vmul.f32 %v1452, %v1455
      %v1459 = vadd.f32 %v1457, %v1458
      %v1460 = vpack.c.bf16 %v546, %v546
      %v1462 = vsel %vm532, %v522, 0
      %v1465 = vsel %vm684, %v1460, 0
      %1467 = vmatprep.subr.bf16.mxu0 0
      %1468 = vmatpush1.bf16.msra.mxu0 %v1465
      %1469 = vmatprep.subr.bf16.mxu0 0
      %1470 = vmatpush1.bf16.msra.mxu0 0
      %1471 = vmatprep.subr.bf16.mxu0 0
      %1472 = vmatpush1.bf16.msra.mxu0 0
      %1473 = vmatprep.subr.bf16.mxu0 0
      %1474 = vmatpush1.bf16.msra.mxu0 0
      %1475 = vmatprep.subr.bf16.mxu0 0
      %1476 = vmatpush1.bf16.msra.mxu0 0
      %1477 = vmatprep.subr.bf16.mxu0 0
      %1478 = vmatpush1.bf16.msra.mxu0 0
      %1479 = vmatprep.subr.bf16.mxu0 0
      %1480 = vmatpush1.bf16.msra.mxu0 0
      %1481 = vmatprep.subr.bf16.mxu0 0
      %1482 = vmatpush1.bf16.msra.mxu0 0
      %1483 = vmatprep.subr.bf16.mxu0 0
      %1484 = vmatpush1.bf16.msra.mxu0 0
      %1485 = vmatprep.subr.bf16.mxu0 0
      %1486 = vmatpush1.bf16.msra.mxu0 0
      %1487 = vmatprep.subr.bf16.mxu0 0
      %1488 = vmatpush1.bf16.msra.mxu0 0
      %1489 = vmatprep.subr.bf16.mxu0 0
      %1490 = vmatpush1.bf16.msra.mxu0 0
      %1491 = vmatprep.subr.bf16.mxu0 0
      %1492 = vmatpush1.bf16.msra.mxu0 0
      %1493 = vmatprep.subr.bf16.mxu0 0
      %1494 = vmatpush1.bf16.msra.mxu0 0
      %1495 = vmatprep.subr.bf16.mxu0 0
      %1496 = vmatpush1.bf16.msra.mxu0 0
      %1497 = vmatprep.subr.bf16.mxu0 0
      %1498 = vmatpush1.bf16.msra.mxu0 0
      %1499 = vmatprep.mubr.bf16.mxu0 0
      %1500 = vmatmul.mubr.bf16.gmra.mrb[0].mxu0 %v1462
      %v1501 = vpop.f32.mrb[0].mxu0
      %v1502 = vadd.f32 0.0, %v1501
      %v1503 = vpop.f32.mrb[0].mxu0
      %v1504 = vpop.f32.mrb[0].mxu0
      %v1505 = vpop.f32.mrb[0].mxu0
      %1506 = vdwg.mxu0
      %v1507 = vmul.f32 %v1459, %v1502
      %1508 = vadd.xlane.f32.xlu0 %v1507
      %v1509 = vpop.xlane.xlu0 %1508
      %v1510 = vmul.f32 %v1509, 0.17677669
      %v1511 = vxor.u32 %v1510, 2147483648
      %v1512 = vmul.f32 %v1511, 1.442695
      %v1513 = vpow.pop %v1512
      %v1514 = vadd.f32 %v1513, 1.0
      %v1515 = vrcp.pop %v1514
      %v1516 = vmul.f32 1.0, %v1515
      %v1517 = vsub.f32 1.0, %v1516
      %v1518 = vmul.f32 %v1517, %v1459
      %v1519 = vmul.f32 %v1516, %v1502
      %v1520 = vadd.f32 %v1518, %v1519
      %v1521 = vmul.f32 %v1520, %v1502
      %1522 = vadd.xlane.f32.xlu0 %v1521
      %v1523 = vpop.xlane.xlu0 %1522
      %v1524 = vsel %vm531, %v1523, -1e+30
      %v1525 = vsel %vm532, %v1524, -inf
      %v1526 = vrot.slane %v1525, 4
      %v1527 = vmax.f32 %v1525, %v1526
      %v1528 = vrot.slane %v1527, 2
      %v1529 = vmax.f32 %v1527, %v1528
      %v1530 = vrot.slane %v1529, 1
      %v1531 = vmax.f32 %v1529, %v1530
      %v1532 = vmul.f32 %v530, %v1531
      %v1533 = vsel %vm532, %v1532, 0.0
      %1534 = vadd.xlane.f32.xlu0 %v1533
      %v1535 = vpop.xlane.xlu0 %1534
      %v1536 = vsub.f32 %v1523, %v1535
      %v1537 = vmul.f32 %v1536, 1.442695
      %v1538 = vpow.pop %v1537
      %v1539 = vmul.f32 %v538, %v1538
      %v1540 = vmul.f32 %v530, %v1539
      %v1541 = vsel %vm532, %v1540, 0.0
      %v1542 = vrot.slane %v1541, 4
      %v1543 = vadd.f32 %v1541, %v1542
      %v1544 = vrot.slane %v1543, 2
      %v1545 = vadd.f32 %v1543, %v1544
      %v1546 = vrot.slane %v1545, 1
      %v1547 = vadd.f32 %v1545, %v1546
      %v1548 = vmul.f32 %v530, %v1547
      %v1549 = vsel %vm532, %v1548, 0.0
      %1550 = vadd.xlane.f32.xlu0 %v1549
      %v1551 = vpop.xlane.xlu0 %1550
      %v1552 = vadd.f32 %v1551, 1e-30
      %v1553 = vrcp.pop %v1552
      %v1554 = vmul.f32 %v1539, %v1553
      %v1555 = vmul.f32 %v1554, %v1520
      %v1556 = vpack.c.bf16 %v1555, %v1555
      %v1558 = vsel %vm532, %v523, 0
      %v1561 = vsel %vm684, %v1556, 0
      %1563 = vmatprep.subr.bf16.mxu0 0
      %1564 = vmatpush1.bf16.msra.mxu0 %v1561
      %1565 = vmatprep.subr.bf16.mxu0 0
      %1566 = vmatpush1.bf16.msra.mxu0 0
      %1567 = vmatprep.subr.bf16.mxu0 0
      %1568 = vmatpush1.bf16.msra.mxu0 0
      %1569 = vmatprep.subr.bf16.mxu0 0
      %1570 = vmatpush1.bf16.msra.mxu0 0
      %1571 = vmatprep.subr.bf16.mxu0 0
      %1572 = vmatpush1.bf16.msra.mxu0 0
      %1573 = vmatprep.subr.bf16.mxu0 0
      %1574 = vmatpush1.bf16.msra.mxu0 0
      %1575 = vmatprep.subr.bf16.mxu0 0
      %1576 = vmatpush1.bf16.msra.mxu0 0
      %1577 = vmatprep.subr.bf16.mxu0 0
      %1578 = vmatpush1.bf16.msra.mxu0 0
      %1579 = vmatprep.subr.bf16.mxu0 0
      %1580 = vmatpush1.bf16.msra.mxu0 0
      %1581 = vmatprep.subr.bf16.mxu0 0
      %1582 = vmatpush1.bf16.msra.mxu0 0
      %1583 = vmatprep.subr.bf16.mxu0 0
      %1584 = vmatpush1.bf16.msra.mxu0 0
      %1585 = vmatprep.subr.bf16.mxu0 0
      %1586 = vmatpush1.bf16.msra.mxu0 0
      %1587 = vmatprep.subr.bf16.mxu0 0
      %1588 = vmatpush1.bf16.msra.mxu0 0
      %1589 = vmatprep.subr.bf16.mxu0 0
      %1590 = vmatpush1.bf16.msra.mxu0 0
      %1591 = vmatprep.subr.bf16.mxu0 0
      %1592 = vmatpush1.bf16.msra.mxu0 0
      %1593 = vmatprep.subr.bf16.mxu0 0
      %1594 = vmatpush1.bf16.msra.mxu0 0
      %1595 = vmatprep.mubr.bf16.mxu0 0
      %1596 = vmatmul.mubr.bf16.gmra.mrb[0].mxu0 %v1558
      %v1597 = vpop.f32.mrb[0].mxu0
      %v1598 = vadd.f32 0.0, %v1597
      %v1599 = vpop.f32.mrb[0].mxu0
      %v1600 = vpop.f32.mrb[0].mxu0
      %v1601 = vpop.f32.mrb[0].mxu0
      %1602 = vdwg.mxu0
    $region186: #{tpu_custom_call.1} parent=1 // loop_footer
      %s544 = sadd.s32 1, %s540
    $region187: #{tpu_custom_call.1} parent=1 // loop_footer_branch
      %539 = sbr.rel target = $region183
    $region188: #{tpu_custom_call.1} parent=1 // loop_exit
      _
    %v1603 = vpack.c.bf16 %v545, %v545
    %v1606 = vunpack.c.l.b16 %v524
    %v1607 = vunpack.c.l.b16 %v525
    %v1608 = vpack.c.b16 %v1607, %v1606
    %v1610 = vsel %vm532, %v1608, 0
    %vm1612 = vcmask 1043456
    %v1614 = vsel %vm1612, %v1603, 0
    %1616 = vmatprep.subr.bf16.mxu0 0
    %1617 = vmatpush1.bf16.msra.mxu0 %v1614
    %1618 = vmatprep.subr.bf16.mxu0 0
    %1619 = vmatpush1.bf16.msra.mxu0 0
    %1620 = vmatprep.subr.bf16.mxu0 0
    %1621 = vmatpush1.bf16.msra.mxu0 0
    %1622 = vmatprep.subr.bf16.mxu0 0
    %1623 = vmatpush1.bf16.msra.mxu0 0
    %1624 = vmatprep.subr.bf16.mxu0 0
    %1625 = vmatpush1.bf16.msra.mxu0 0
    %1626 = vmatprep.subr.bf16.mxu0 0
    %1627 = vmatpush1.bf16.msra.mxu0 0
    %1628 = vmatprep.subr.bf16.mxu0 0
    %1629 = vmatpush1.bf16.msra.mxu0 0
    %1630 = vmatprep.subr.bf16.mxu0 0
    %1631 = vmatpush1.bf16.msra.mxu0 0
    %1632 = vmatprep.subr.bf16.mxu0 0
    %1633 = vmatpush1.bf16.msra.mxu0 0
    %1634 = vmatprep.subr.bf16.mxu0 0
    %1635 = vmatpush1.bf16.msra.mxu0 0
    %1636 = vmatprep.subr.bf16.mxu0 0
    %1637 = vmatpush1.bf16.msra.mxu0 0
    %1638 = vmatprep.subr.bf16.mxu0 0
    %1639 = vmatpush1.bf16.msra.mxu0 0
    %1640 = vmatprep.subr.bf16.mxu0 0
    %1641 = vmatpush1.bf16.msra.mxu0 0
    %1642 = vmatprep.subr.bf16.mxu0 0
    %1643 = vmatpush1.bf16.msra.mxu0 0
    %1644 = vmatprep.subr.bf16.mxu0 0
    %1645 = vmatpush1.bf16.msra.mxu0 0
    %1646 = vmatprep.subr.bf16.mxu0 0
    %1647 = vmatpush1.bf16.msra.mxu0 0
    %1648 = vmatprep.mubr.bf16.mxu0 0
    %1649 = vmatmul.mubr.bf16.gmra.mrb[0].mxu0 %v1610
    %v1650 = vpop.f32.mrb[0].mxu0
    %v1651 = vadd.f32 0.0, %v1650
    %v1652 = vpop.f32.mrb[0].mxu0
    %v1653 = vpop.f32.mrb[0].mxu0
    %v1654 = vadd.f32 0.0, %v1653
    %v1655 = vpop.f32.mrb[0].mxu0
    %1656 = vdwg.mxu0
    %v1657 = vlaneseq
    %v1658 = vshrl.u32 %v1657, 7
    %v1659 = vsub.s32 0, %v1658
    %v1660 = vrot.slane %v527, %v1659
    %1662 = vbcast.lane.b32.xlu0 %v1660, 256
    %v1663 = vpop.permute.xlu0 %1662
    %v1664 = vlaneseq
    %v1665 = vshrl.u32 %v1664, 7
    %v1666 = vsub.s32 1, %v1665
    %v1667 = vrot.slane %v527, %v1666
    %1669 = vbcast.lane.b32.xlu0 %v1667, 256
    %v1670 = vpop.permute.xlu0 %1669
    %v1671 = vmul.f32 %v526, %v1663
    %v1672 = vmul.f32 %v526, %v1670
    %v1673 = vadd.f32 %v1651, %v1671
    %v1674 = vadd.f32 %v1654, %v1672
    %v1675 = vlaneseq
    %v1676 = vshrl.u32 %v1675, 7
    %v1677 = vsub.s32 0, %v1676
    %v1678 = vrot.slane %v528, %v1677
    %1680 = vbcast.lane.b32.xlu0 %v1678, 256
    %v1681 = vpop.permute.xlu0 %1680
    %v1682 = vlaneseq
    %v1683 = vshrl.u32 %v1682, 7
    %v1684 = vsub.s32 1, %v1683
    %v1685 = vrot.slane %v528, %v1684
    %1687 = vbcast.lane.b32.xlu0 %v1685, 256
    %v1688 = vpop.permute.xlu0 %1687
    %v1689 = vmul.f32 %v1681, %v1673
    %v1690 = vmul.f32 %v1688, %v1674
    %v1691 = vrot.slane %v1689, 4
    %v1692 = vadd.f32 %v1689, %v1691
    %v1693 = vrot.slane %v1692, 2
    %v1694 = vadd.f32 %v1692, %v1693
    %v1695 = vrot.slane %v1694, 1
    %v1696 = vadd.f32 %v1694, %v1695
    %v1697 = vrot.slane %v1690, 4
    %v1698 = vadd.f32 %v1690, %v1697
    %v1699 = vrot.slane %v1698, 2
    %v1700 = vadd.f32 %v1698, %v1699
    %v1701 = vrot.slane %v1700, 1
    %v1702 = vadd.f32 %v1700, %v1701
    %v1703 = vpack.c.bf16 %v1696, %v1696
    %v1704 = vpack.c.bf16 %v1702, %v1702
    %v1707 = vunpack.c.l.b16 %v1703
    %v1708 = vunpack.c.l.b16 %v1704
    %vm1709 = vcmask 1041409
    %v1710 = vsel %vm1709, %v1708, %v1707
    %v1711 = vpack.c.b16 %v1710, %v1710
    %v1729 = vunpack.c.l.b16 %v435
    %v1730 = vunpack.c.l.b16 %v436
    %v1731 = vunpack.c.l.b16 %v437
    %v1732 = vunpack.c.l.b16 %v438
    %v1733 = vunpack.c.l.b16 %v439
    %v1734 = vunpack.c.l.b16 %v440
    %v1735 = vunpack.c.l.b16 %v441
    %v1736 = vunpack.c.l.b16 %v442
    %v1737 = vunpack.c.l.b16 %v443
    %v1738 = vunpack.c.l.b16 %v444
    %v1739 = vunpack.c.l.b16 %v445
    %v1740 = vunpack.c.l.b16 %v446
    %v1741 = vunpack.c.l.b16 %v447
    %v1742 = vunpack.c.l.b16 %v448
    %v1743 = vunpack.c.l.b16 %v449
    %v1744 = vunpack.c.l.b16 %v450
    %v1745 = vpack.c.b16 %v1730, %v1729
    %v1746 = vpack.c.b16 %v1732, %v1731
    %v1747 = vpack.c.b16 %v1734, %v1733
    %v1748 = vpack.c.b16 %v1736, %v1735
    %v1749 = vpack.c.b16 %v1738, %v1737
    %v1750 = vpack.c.b16 %v1740, %v1739
    %v1751 = vpack.c.b16 %v1742, %v1741
    %v1752 = vpack.c.b16 %v1744, %v1743
    %1761 = vmatprep.subr.bf16.mxu0 0
    %1762 = vmatpush1.bf16.msra.mxu0 %v1745
    %1763 = vmatprep.subr.bf16.mxu0 0
    %1764 = vmatpush1.bf16.msra.mxu0 %v1746
    %1765 = vmatprep.subr.bf16.mxu0 0
    %1766 = vmatpush1.bf16.msra.mxu0 %v1747
    %1767 = vmatprep.subr.bf16.mxu0 0
    %1768 = vmatpush1.bf16.msra.mxu0 %v1748
    %1769 = vmatprep.subr.bf16.mxu0 0
    %1770 = vmatpush1.bf16.msra.mxu0 %v1749
    %1771 = vmatprep.subr.bf16.mxu0 0
    %1772 = vmatpush1.bf16.msra.mxu0 %v1750
    %1773 = vmatprep.subr.bf16.mxu0 0
    %1774 = vmatpush1.bf16.msra.mxu0 %v1751
    %1775 = vmatprep.subr.bf16.mxu0 0
    %1776 = vmatpush1.bf16.msra.mxu0 %v1752
    %1777 = vmatprep.subr.bf16.mxu0 0
    %1778 = vmatpush1.bf16.msra.mxu0 0
    %1779 = vmatprep.subr.bf16.mxu0 0
    %1780 = vmatpush1.bf16.msra.mxu0 0
    %1781 = vmatprep.subr.bf16.mxu0 0
    %1782 = vmatpush1.bf16.msra.mxu0 0
    %1783 = vmatprep.subr.bf16.mxu0 0
    %1784 = vmatpush1.bf16.msra.mxu0 0
    %1785 = vmatprep.subr.bf16.mxu0 0
    %1786 = vmatpush1.bf16.msra.mxu0 0
    %1787 = vmatprep.subr.bf16.mxu0 0
    %1788 = vmatpush1.bf16.msra.mxu0 0
    %1789 = vmatprep.subr.bf16.mxu0 0
    %1790 = vmatpush1.bf16.msra.mxu0 0
    %1791 = vmatprep.subr.bf16.mxu0 0
    %1792 = vmatpush1.bf16.msra.mxu0 0
    %1793 = vmatprep.mubr.bf16.mxu0 0
    %1794 = vmatmul.mubr.bf16.gmra.mrb[0].mxu0 %v1711
    %v1795 = vpop.f32.mrb[0].mxu0
    %v1796 = vadd.f32 0.0, %v1795
    %v1797 = vpop.f32.mrb[0].mxu0
    %v1798 = vpop.f32.mrb[0].mxu0
    %v1799 = vpop.f32.mrb[0].mxu0
    %1800 = vdwg.mxu0
    %v1801 = vpack.c.bf16 %v1674, %v1673
    %v1818 = vunpack.c.l.b16 %v451
    %v1819 = vunpack.c.l.b16 %v452
    %v1820 = vunpack.c.l.b16 %v453
    %v1821 = vunpack.c.l.b16 %v454
    %v1822 = vunpack.c.l.b16 %v455
    %v1823 = vunpack.c.l.b16 %v456
    %v1824 = vunpack.c.l.b16 %v457
    %v1825 = vunpack.c.l.b16 %v458
    %v1826 = vunpack.c.l.b16 %v459
    %v1827 = vunpack.c.l.b16 %v460
    %v1828 = vunpack.c.l.b16 %v461
    %v1829 = vunpack.c.l.b16 %v462
    %v1830 = vunpack.c.l.b16 %v463
    %v1831 = vunpack.c.l.b16 %v464
    %v1832 = vunpack.c.l.b16 %v465
    %v1833 = vunpack.c.l.b16 %v466
    %v1834 = vpack.c.b16 %v1819, %v1818
    %v1835 = vpack.c.b16 %v1821, %v1820
    %v1836 = vpack.c.b16 %v1823, %v1822
    %v1837 = vpack.c.b16 %v1825, %v1824
    %v1838 = vpack.c.b16 %v1827, %v1826
    %v1839 = vpack.c.b16 %v1829, %v1828
    %v1840 = vpack.c.b16 %v1831, %v1830
    %v1841 = vpack.c.b16 %v1833, %v1832
    %1850 = vmatprep.subr.bf16.mxu0 0
    %1851 = vmatpush1.bf16.msra.mxu0 %v1834
    %1852 = vmatprep.subr.bf16.mxu0 0
    %1853 = vmatpush1.bf16.msra.mxu0 %v1835
    %1854 = vmatprep.subr.bf16.mxu0 0
    %1855 = vmatpush1.bf16.msra.mxu0 %v1836
    %1856 = vmatprep.subr.bf16.mxu0 0
    %1857 = vmatpush1.bf16.msra.mxu0 %v1837
    %1858 = vmatprep.subr.bf16.mxu0 0
    %1859 = vmatpush1.bf16.msra.mxu0 %v1838
    %1860 = vmatprep.subr.bf16.mxu0 0
    %1861 = vmatpush1.bf16.msra.mxu0 %v1839
    %1862 = vmatprep.subr.bf16.mxu0 0
    %1863 = vmatpush1.bf16.msra.mxu0 %v1840
    %1864 = vmatprep.subr.bf16.mxu0 0
    %1865 = vmatpush1.bf16.msra.mxu0 %v1841
    %1866 = vmatprep.subr.bf16.mxu0 0
    %1867 = vmatpush1.bf16.msra.mxu0 0
    %1868 = vmatprep.subr.bf16.mxu0 0
    %1869 = vmatpush1.bf16.msra.mxu0 0
    %1870 = vmatprep.subr.bf16.mxu0 0
    %1871 = vmatpush1.bf16.msra.mxu0 0
    %1872 = vmatprep.subr.bf16.mxu0 0
    %1873 = vmatpush1.bf16.msra.mxu0 0
    %1874 = vmatprep.subr.bf16.mxu0 0
    %1875 = vmatpush1.bf16.msra.mxu0 0
    %1876 = vmatprep.subr.bf16.mxu0 0
    %1877 = vmatpush1.bf16.msra.mxu0 0
    %1878 = vmatprep.subr.bf16.mxu0 0
    %1879 = vmatpush1.bf16.msra.mxu0 0
    %1880 = vmatprep.subr.bf16.mxu0 0
    %1881 = vmatpush1.bf16.msra.mxu0 0
    %1882 = vmatprep.mubr.bf16.mxu0 0
    %1883 = vmatmul.mubr.bf16.gmra.mrb[0].mxu0 %v1801
    %v1884 = vpop.f32.mrb[0].mxu0
    %v1885 = vadd.f32 0.0, %v1884
    %v1886 = vpop.f32.mrb[0].mxu0
    %v1887 = vpop.f32.mrb[0].mxu0
    %v1888 = vadd.f32 0.0, %v1887
    %v1889 = vpop.f32.mrb[0].mxu0
    %1890 = vdwg.mxu0
    %v1891 = vpack.c.bf16 %v546, %v546
    %v1908 = vunpack.c.l.b16 %v467
    %v1909 = vunpack.c.l.b16 %v468
    %v1910 = vunpack.c.l.b16 %v469
    %v1911 = vunpack.c.l.b16 %v470
    %v1912 = vunpack.c.l.b16 %v471
    %v1913 = vunpack.c.l.b16 %v472
    %v1914 = vunpack.c.l.b16 %v473
    %v1915 = vunpack.c.l.b16 %v474
    %v1916 = vunpack.c.l.b16 %v475
    %v1917 = vunpack.c.l.b16 %v476
    %v1918 = vunpack.c.l.b16 %v477
    %v1919 = vunpack.c.l.b16 %v478
    %v1920 = vunpack.c.l.b16 %v479
    %v1921 = vunpack.c.l.b16 %v480
    %v1922 = vunpack.c.l.b16 %v481
    %v1923 = vunpack.c.l.b16 %v482
    %v1924 = vpack.c.b16 %v1909, %v1908
    %v1925 = vpack.c.b16 %v1911, %v1910
    %v1926 = vpack.c.b16 %v1913, %v1912
    %v1927 = vpack.c.b16 %v1915, %v1914
    %v1928 = vpack.c.b16 %v1917, %v1916
    %v1929 = vpack.c.b16 %v1919, %v1918
    %v1930 = vpack.c.b16 %v1921, %v1920
    %v1931 = vpack.c.b16 %v1923, %v1922
    %1940 = vmatprep.subr.bf16.mxu0 0
    %1941 = vmatpush1.bf16.msra.mxu0 %v1924
    %1942 = vmatprep.subr.bf16.mxu0 0
    %1943 = vmatpush1.bf16.msra.mxu0 %v1925
    %1944 = vmatprep.subr.bf16.mxu0 0
    %1945 = vmatpush1.bf16.msra.mxu0 %v1926
    %1946 = vmatprep.subr.bf16.mxu0 0
    %1947 = vmatpush1.bf16.msra.mxu0 %v1927
    %1948 = vmatprep.subr.bf16.mxu0 0
    %1949 = vmatpush1.bf16.msra.mxu0 %v1928
    %1950 = vmatprep.subr.bf16.mxu0 0
    %1951 = vmatpush1.bf16.msra.mxu0 %v1929
    %1952 = vmatprep.subr.bf16.mxu0 0
    %1953 = vmatpush1.bf16.msra.mxu0 %v1930
    %1954 = vmatprep.subr.bf16.mxu0 0
    %1955 = vmatpush1.bf16.msra.mxu0 %v1931
    %1956 = vmatprep.subr.bf16.mxu0 0
    %1957 = vmatpush1.bf16.msra.mxu0 0
    %1958 = vmatprep.subr.bf16.mxu0 0
    %1959 = vmatpush1.bf16.msra.mxu0 0
    %1960 = vmatprep.subr.bf16.mxu0 0
    %1961 = vmatpush1.bf16.msra.mxu0 0
    %1962 = vmatprep.subr.bf16.mxu0 0
    %1963 = vmatpush1.bf16.msra.mxu0 0
    %1964 = vmatprep.subr.bf16.mxu0 0
    %1965 = vmatpush1.bf16.msra.mxu0 0
    %1966 = vmatprep.subr.bf16.mxu0 0
    %1967 = vmatpush1.bf16.msra.mxu0 0
    %1968 = vmatprep.subr.bf16.mxu0 0
    %1969 = vmatpush1.bf16.msra.mxu0 0
    %1970 = vmatprep.subr.bf16.mxu0 0
    %1971 = vmatpush1.bf16.msra.mxu0 0
    %1972 = vmatprep.mubr.bf16.mxu0 0
    %1973 = vmatmul.mubr.bf16.gmra.mrb[0].mxu0 %v1891
    %v1974 = vpop.f32.mrb[0].mxu0
    %v1975 = vadd.f32 0.0, %v1974
    %v1976 = vpop.f32.mrb[0].mxu0
    %v1977 = vpop.f32.mrb[0].mxu0
    %v1978 = vpop.f32.mrb[0].mxu0
    %1979 = vdwg.mxu0
    %v1982 = vunpack.c.l.s4 1966171168
    %v1983 = vunpack.c.0.s8 %v1982
    %v1984 = vlaneseq
    %v1985 = vshrl.u32 %v1984, 7
    %v1986 = vsub.s32 %v1983, %v1985
    %v1987 = vrot.slane %v1796, %v1986
    %v1988 = vcombine.high %v1987, %v1987
    %v1990 = vunpack.c.l.s4 1966171168
    %v1991 = vunpack.c.0.s8 %v1990
    %v1992 = vlaneseq
    %v1993 = vshrl.u32 %v1992, 7
    %v1994 = vsub.s32 %v1991, %v1993
    %v1995 = vrot.slane %v1987, %v1994
    %v1997 = vunpack.c.l.s4 1966171168
    %v1998 = vunpack.c.0.s8 %v1997
    %v1999 = vlaneseq
    %v2000 = vshrl.u32 %v1999, 7
    %v2001 = vsub.s32 %v1998, %v2000
    %v2002 = vrot.slane %v1988, %v2001
    %v2003 = vlaneseq
    %v2004 = vshrl.u32 %v2003, 7
    %v2005 = vsub.s32 0, %v2004
    %v2006 = vrot.slane %v1995, %v2005
    %v2007 = vlaneseq
    %v2008 = vshrl.u32 %v2007, 7
    %v2009 = vsub.s32 0, %v2008
    %v2010 = vrot.slane %v2002, %v2009
    %v2013 = vadd.f32 %v2006, %v1885
    %v2014 = vadd.f32 %v2010, %v1888
    %v2017 = vunpack.c.l.s4 1966171168
    %v2018 = vunpack.c.0.s8 %v2017
    %v2019 = vlaneseq
    %v2020 = vshrl.u32 %v2019, 7
    %v2021 = vsub.s32 %v2018, %v2020
    %v2022 = vrot.slane %v1975, %v2021
    %v2023 = vcombine.high %v2022, %v2022
    %v2025 = vunpack.c.l.s4 1966171168
    %v2026 = vunpack.c.0.s8 %v2025
    %v2027 = vlaneseq
    %v2028 = vshrl.u32 %v2027, 7
    %v2029 = vsub.s32 %v2026, %v2028
    %v2030 = vrot.slane %v2022, %v2029
    %v2032 = vunpack.c.l.s4 1966171168
    %v2033 = vunpack.c.0.s8 %v2032
    %v2034 = vlaneseq
    %v2035 = vshrl.u32 %v2034, 7
    %v2036 = vsub.s32 %v2033, %v2035
    %v2037 = vrot.slane %v2023, %v2036
    %v2038 = vlaneseq
    %v2039 = vshrl.u32 %v2038, 7
    %v2040 = vsub.s32 0, %v2039
    %v2041 = vrot.slane %v2030, %v2040
    %v2042 = vlaneseq
    %v2043 = vshrl.u32 %v2042, 7
    %v2044 = vsub.s32 0, %v2043
    %v2045 = vrot.slane %v2037, %v2044
    %v2048 = vadd.f32 %v2013, %v2041
    %v2049 = vadd.f32 %v2014, %v2045
    %v2051 = vlaneseq
    %v2052 = vshrl.u32 %v2051, 7
    %v2053 = vsub.s32 0, %v2052
    %v2054 = vrot.slane %v483, %v2053
    %v2056 = vadd.f32 %v2048, %v2054
    %v2057 = vadd.f32 %v2049, %v2054
    %v2058 = vxor.u32 %v2056, 2147483648
    %v2059 = vxor.u32 %v2057, 2147483648
    %v2060 = vmul.f32 %v2058, 1.442695
    %v2061 = vpow.pop %v2060
    %v2062 = vmul.f32 %v2059, 1.442695
    %v2063 = vpow.pop %v2062
    %v2064 = vadd.f32 %v2061, 1.0
    %v2065 = vadd.f32 %v2063, 1.0
    %v2066 = vrcp.pop %v2064
    %v2067 = vmul.f32 1.0, %v2066
    %v2068 = vrcp.pop %v2065
    %v2069 = vmul.f32 1.0, %v2068
    %v2071 = vlaneseq
    %v2072 = vshrl.u32 %v2071, 7
    %v2073 = vsub.s32 0, %v2072
    %v2074 = vrot.slane %v484, %v2073
    %v2076 = vmul.f32 %v2067, %v2074
    %v2077 = vmul.f32 %v2069, %v2074
    %2078 = vadd.xlane.f32.xlu0 %v2076
    %v2079 = vpop.xlane.xlu0 %2078
    %2080 = vadd.xlane.f32.xlu0 %v2077
    %v2081 = vpop.xlane.xlu0 %2080
    %v2082 = vmul.f32 %v2079, %v1673
    %v2083 = vmul.f32 %v2081, %v1674
    %v2084 = vlaneseq
    %v2085 = vshrl.u32 %v2084, 7
    %v2086 = vsub.s32 0, %v2085
    %v2087 = vrot.slane %v529, %v2086
    %2089 = vbcast.lane.b32.xlu0 %v2087, 256
    %v2090 = vpop.permute.xlu0 %2089
    %v2091 = vlaneseq
    %v2092 = vshrl.u32 %v2091, 7
    %v2093 = vsub.s32 1, %v2092
    %v2094 = vrot.slane %v529, %v2093
    %2096 = vbcast.lane.b32.xlu0 %v2094, 256
    %v2097 = vpop.permute.xlu0 %2096
    %v2098 = vmul.f32 %v2082, %v2090
    %v2099 = vmul.f32 %v2083, %v2097
    %v2100 = vrot.slane %v2098, 4
    %v2101 = vadd.f32 %v2098, %v2100
    %v2102 = vrot.slane %v2101, 2
    %v2103 = vadd.f32 %v2101, %v2102
    %v2104 = vrot.slane %v2103, 1
    %v2105 = vadd.f32 %v2103, %v2104
    %v2106 = vrot.slane %v2099, 4
    %v2107 = vadd.f32 %v2099, %v2106
    %v2108 = vrot.slane %v2107, 2
    %v2109 = vadd.f32 %v2107, %v2108
    %v2110 = vrot.slane %v2109, 1
    %v2111 = vadd.f32 %v2109, %v2110
    %v2112 = vpack.c.bf16 %v2105, %v2105
    %v2113 = vpack.c.bf16 %v2111, %v2111
    %v2130 = vunpack.c.l.b16 %v501
    %v2131 = vunpack.c.l.b16 %v502
    %v2132 = vunpack.c.l.b16 %v503
    %v2133 = vunpack.c.l.b16 %v504
    %v2134 = vunpack.c.l.b16 %v505
    %v2135 = vunpack.c.l.b16 %v506
    %v2136 = vunpack.c.l.b16 %v507
    %v2137 = vunpack.c.l.b16 %v508
    %v2138 = vunpack.c.l.b16 %v509
    %v2139 = vunpack.c.l.b16 %v510
    %v2140 = vunpack.c.l.b16 %v511
    %v2141 = vunpack.c.l.b16 %v512
    %v2142 = vunpack.c.l.b16 %v513
    %v2143 = vunpack.c.l.b16 %v514
    %v2144 = vunpack.c.l.b16 %v515
    %v2145 = vunpack.c.l.b16 %v516
    %v2146 = vpack.c.b16 %v2131, %v2130
    %v2147 = vpack.c.b16 %v2133, %v2132
    %v2148 = vpack.c.b16 %v2135, %v2134
    %v2149 = vpack.c.b16 %v2137, %v2136
    %v2150 = vpack.c.b16 %v2139, %v2138
    %v2151 = vpack.c.b16 %v2141, %v2140
    %v2152 = vpack.c.b16 %v2143, %v2142
    %v2153 = vpack.c.b16 %v2145, %v2144
    %2162 = vmatprep.subr.bf16.mxu0 0
    %2163 = vmatpush1.bf16.msra.mxu0 %v2146
    %2164 = vmatprep.subr.bf16.mxu0 0
    %2165 = vmatpush1.bf16.msra.mxu0 %v2147
    %2166 = vmatprep.subr.bf16.mxu0 0
    %2167 = vmatpush1.bf16.msra.mxu0 %v2148
    %2168 = vmatprep.subr.bf16.mxu0 0
    %2169 = vmatpush1.bf16.msra.mxu0 %v2149
    %2170 = vmatprep.subr.bf16.mxu0 0
    %2171 = vmatpush1.bf16.msra.mxu0 %v2150
    %2172 = vmatprep.subr.bf16.mxu0 0
    %2173 = vmatpush1.bf16.msra.mxu0 %v2151
    %2174 = vmatprep.subr.bf16.mxu0 0
    %2175 = vmatpush1.bf16.msra.mxu0 %v2152
    %2176 = vmatprep.subr.bf16.mxu0 0
    %2177 = vmatpush1.bf16.msra.mxu0 %v2153
    %2178 = vmatprep.subr.bf16.mxu0 0
    %2179 = vmatpush1.bf16.msra.mxu0 0
    %2180 = vmatprep.subr.bf16.mxu0 0
    %2181 = vmatpush1.bf16.msra.mxu0 0
    %2182 = vmatprep.subr.bf16.mxu0 0
    %2183 = vmatpush1.bf16.msra.mxu0 0
    %2184 = vmatprep.subr.bf16.mxu0 0
    %2185 = vmatpush1.bf16.msra.mxu0 0
    %2186 = vmatprep.subr.bf16.mxu0 0
    %2187 = vmatpush1.bf16.msra.mxu0 0
    %2188 = vmatprep.subr.bf16.mxu0 0
    %2189 = vmatpush1.bf16.msra.mxu0 0
    %2190 = vmatprep.subr.bf16.mxu0 0
    %2191 = vmatpush1.bf16.msra.mxu0 0
    %2192 = vmatprep.subr.bf16.mxu0 0
    %2193 = vmatpush1.bf16.msra.mxu0 0
    %2194 = vmatprep.mubr.bf16.mxu0 0
    %2195 = vmatmul.mubr.bf16.gmra.mrb[0].mxu0 %v1711
    %v2196 = vpop.f32.mrb[0].mxu0
    %v2197 = vadd.f32 0.0, %v2196
    %v2198 = vpop.f32.mrb[0].mxu0
    %v2199 = vpop.f32.mrb[0].mxu0
    %v2200 = vpop.f32.mrb[0].mxu0
    %2201 = vdwg.mxu0
    %v2204 = vunpack.c.l.b16 %v2112
    %v2205 = vunpack.c.l.b16 %v2113
    %v2206 = vsel %vm1709, %v2205, %v2204
    %v2207 = vpack.c.b16 %v2206, %v2206
    %v2225 = vunpack.c.l.b16 %v485
    %v2226 = vunpack.c.l.b16 %v486
    %v2227 = vunpack.c.l.b16 %v487
    %v2228 = vunpack.c.l.b16 %v488
    %v2229 = vunpack.c.l.b16 %v489
    %v2230 = vunpack.c.l.b16 %v490
    %v2231 = vunpack.c.l.b16 %v491
    %v2232 = vunpack.c.l.b16 %v492
    %v2233 = vunpack.c.l.b16 %v493
    %v2234 = vunpack.c.l.b16 %v494
    %v2235 = vunpack.c.l.b16 %v495
    %v2236 = vunpack.c.l.b16 %v496
    %v2237 = vunpack.c.l.b16 %v497
    %v2238 = vunpack.c.l.b16 %v498
    %v2239 = vunpack.c.l.b16 %v499
    %v2240 = vunpack.c.l.b16 %v500
    %v2241 = vpack.c.b16 %v2226, %v2225
    %v2242 = vpack.c.b16 %v2228, %v2227
    %v2243 = vpack.c.b16 %v2230, %v2229
    %v2244 = vpack.c.b16 %v2232, %v2231
    %v2245 = vpack.c.b16 %v2234, %v2233
    %v2246 = vpack.c.b16 %v2236, %v2235
    %v2247 = vpack.c.b16 %v2238, %v2237
    %v2248 = vpack.c.b16 %v2240, %v2239
    %2257 = vmatprep.subr.bf16.mxu0 0
    %2258 = vmatpush1.bf16.msra.mxu0 %v2241
    %2259 = vmatprep.subr.bf16.mxu0 0
    %2260 = vmatpush1.bf16.msra.mxu0 %v2242
    %2261 = vmatprep.subr.bf16.mxu0 0
    %2262 = vmatpush1.bf16.msra.mxu0 %v2243
    %2263 = vmatprep.subr.bf16.mxu0 0
    %2264 = vmatpush1.bf16.msra.mxu0 %v2244
    %2265 = vmatprep.subr.bf16.mxu0 0
    %2266 = vmatpush1.bf16.msra.mxu0 %v2245
    %2267 = vmatprep.subr.bf16.mxu0 0
    %2268 = vmatpush1.bf16.msra.mxu0 %v2246
    %2269 = vmatprep.subr.bf16.mxu0 0
    %2270 = vmatpush1.bf16.msra.mxu0 %v2247
    %2271 = vmatprep.subr.bf16.mxu0 0
    %2272 = vmatpush1.bf16.msra.mxu0 %v2248
    %2273 = vmatprep.subr.bf16.mxu0 0
    %2274 = vmatpush1.bf16.msra.mxu0 0
    %2275 = vmatprep.subr.bf16.mxu0 0
    %2276 = vmatpush1.bf16.msra.mxu0 0
    %2277 = vmatprep.subr.bf16.mxu0 0
    %2278 = vmatpush1.bf16.msra.mxu0 0
    %2279 = vmatprep.subr.bf16.mxu0 0
    %2280 = vmatpush1.bf16.msra.mxu0 0
    %2281 = vmatprep.subr.bf16.mxu0 0
    %2282 = vmatpush1.bf16.msra.mxu0 0
    %2283 = vmatprep.subr.bf16.mxu0 0
    %2284 = vmatpush1.bf16.msra.mxu0 0
    %2285 = vmatprep.subr.bf16.mxu0 0
    %2286 = vmatpush1.bf16.msra.mxu0 0
    %2287 = vmatprep.subr.bf16.mxu0 0
    %2288 = vmatpush1.bf16.msra.mxu0 0
    %2289 = vmatprep.mubr.bf16.mxu0 0
    %2290 = vmatmul.mubr.bf16.gmra.mrb[0].mxu0 %v2207
    %v2291 = vpop.f32.mrb[0].mxu0
    %v2292 = vadd.f32 %v2197, %v2291
    %v2293 = vpop.f32.mrb[0].mxu0
    %v2294 = vpop.f32.mrb[0].mxu0
    %v2295 = vpop.f32.mrb[0].mxu0
    %2296 = vdwg.mxu0
    %v2298 = vlaneseq
    %v2299 = vshrl.u32 %v2298, 7
    %v2300 = vsub.s32 0, %v2299
    %v2301 = vrot.slane %v517, %v2300
    %v2303 = vadd.f32 %v2292, %v2301
    %v2304 = vlaneseq
    %v2305 = vand.u32 %v2304, 127
    %vm2306 = vcmp.lt.s32.totalorder %v2305, 32
    %v2307 = vsel %vm2306, 1, 0
    %v2308 = vcvt.s32.f32 %v2307
    %vm2309 = vcmask 1041408
    %v2310 = vsel %vm2309, %v2303, 0.0
    %2311 = vadd.xlane.f32.xlu0 %v2310
    %v2312 = vpop.xlane.xlu0 %2311
    %v2313 = vmul.f32 %v2312, 0.03125
    %v2314 = vsub.f32 %v2303, %v2313
    %v2315 = vmul.f32 %v2314, %v2308
    %v2316 = vmul.f32 %v2315, %v2315
    %v2317 = vsel %vm2309, %v2316, 0.0
    %2318 = vadd.xlane.f32.xlu0 %v2317
    %v2319 = vpop.xlane.xlu0 %2318
    %v2320 = vadd.f32 %v2319, 1e-24
    %v2321 = vrsqrt.pop %v2320
    %v2322 = vmul.f32 %v2315, %v2321
    %2323 = vst [vmem:[#allocation32] sm:$0x3] %v2322
    // Predicated region
    $region189: #{tpu_custom_call.1} parent=1 // pred_check
      _
    $region190: #{tpu_custom_call.1} parent=1 // pred_check_branch
      %2325 = sbr.rel (0) target = $region192
    $region191: #{tpu_custom_call.1} parent=1 // pred_region
      %s2327 = ssub.s32 32, 32
      %2328 = vsyncadd [#allocation4], %s2327
      %s2330 = sshll.u32 [#allocation32], 4
      %s2331 = int_to_ptr.vmem [resolvable:$true] %s2330
      %2333 = dma.vmem_to_hbm [thread:$0]  %s2331, 32, %s26, [#allocation4]
    $region192: #{tpu_custom_call.1} parent=1 // pred_fallthru
      _
    // Predicated region
    $region193: #{tpu_custom_call.1} parent=1 // pred_check
      _
    $region194: #{tpu_custom_call.1} parent=1 // pred_check_branch
      %2335 = sbr.rel (0) target = $region196
    $region195: #{tpu_custom_call.1} parent=1 // pred_region
      %2336 = dma.done [#allocation4], 32
    $region196: #{tpu_custom_call.1} parent=1 // pred_fallthru
      _
    %2337 = vsyncpa [#allocation3], 1
    %2338 = vsyncpa [#allocation6], 1
    %2339 = vsyncpa [#allocation9], 1
    %2340 = vsyncpa [#allocation12], 1
    %2341 = vsyncpa [#allocation15], 1
    %2342 = vsyncpa [#allocation18], 1
    %2343 = vsyncpa [#allocation21], 1
    %2344 = vsyncpa [#allocation24], 1
    %2345 = vsyncpa [#allocation27], 1
    %2346 = vsyncpa [#allocation30], 1
    %2347 = vsyncpa [#allocation4], 1

</llo_original>
